<compile_context>
chip_gen: v5e
topology: v5e:2x2
jax: 0.10.0
libtpu: 0.0.40
codegen_flags: <defaults>
</compile_context>

<pallas_src>
import numpy as np

import jax
import jax.numpy as jnp
from jax.experimental import pallas as pl
from jax.experimental.pallas import tpu as pltpu


# ----------------------------------------------------------------------------
# helpers
# ----------------------------------------------------------------------------
def _round_up(n, m):
    return (n + m - 1) // m * m


def _pick_tile(n, candidates):
    for c in candidates:
        if c <= n and n % c == 0:
            return c
    return n


def _pad2(x, rows, cols, dtype):
    x = jnp.asarray(x, jnp.float32)
    out = jnp.zeros((rows, cols), jnp.float32)
    out = out.at[: x.shape[0], : x.shape[1]].set(x)
    return out.astype(dtype)


# ----------------------------------------------------------------------------
# Kernel 1: one GINConv layer
#   h = leaky( BN( ((1+eps)*x_dst + A @ x_src) @ W + b ) ),  BN folded (eval)
# Grid: (row tiles [parallel], source-node K tiles [arbitrary])
# ----------------------------------------------------------------------------
def _gin_conv_kernel(a_ref, xs_ref, xr_ref, w_ref, vec_ref, eps_ref,
                     h_ref, acc_ref):
    f32, bf16 = jnp.float32, jnp.bfloat16
    k = pl.program_id(1)

    @pl.when(k == 0)
    def _():
        # fold (1+eps) * x_dst into the aggregation accumulator
        acc_ref[...] = eps_ref[0] * xr_ref[...].astype(f32)

    acc_ref[...] += jnp.dot(a_ref[...], xs_ref[...], preferred_element_type=f32)

    @pl.when(k == pl.num_programs(1) - 1)
    def _():
        vec = vec_ref[...]
        b, s, t = vec[0:1], vec[1:2], vec[2:3]
        h = jnp.dot(acc_ref[...].astype(bf16), w_ref[...],
                    preferred_element_type=f32) + b
        h = h * s + t                       # folded BatchNorm1d (eval mode)
        h_ref[...] = jnp.maximum(h, 0.2 * h).astype(h_ref.dtype)  # leaky_relu


def _gin_conv_layer(a_pad, x_pad, w_pad, vec_pad, eps_scale, *, tm, tk,
                    out_dtype):
    Np = a_pad.shape[0]
    Fin = x_pad.shape[1]
    Hp = w_pad.shape[1]
    grid = (Np // tm, Np // tk)
    cost = pl.CostEstimate(
        flops=int(2 * Np * Np * Fin + 2 * Np * Fin * Hp),
        transcendentals=0,
        bytes_accessed=int(Np * Np * 2 + 2 * Np * Fin * 2 + Fin * Hp * 2
                           + Np * Hp * jnp.dtype(out_dtype).itemsize),
    )
    return pl.pallas_call(
        _gin_conv_kernel,
        out_shape=jax.ShapeDtypeStruct((Np, Hp), out_dtype),
        grid_spec=pltpu.PrefetchScalarGridSpec(
            num_scalar_prefetch=0,
            grid=grid,
            in_specs=[
                pl.BlockSpec((tm, tk), lambda i, k: (i, k)),        # A slab
                pl.BlockSpec((tk, Fin), lambda i, k: (k, 0)),       # x source
                pl.BlockSpec((tm, Fin), lambda i, k: (i, 0)),       # x dest
                pl.BlockSpec((Fin, Hp), lambda i, k: (0, 0)),       # W
                pl.BlockSpec((3, Hp), lambda i, k: (0, 0)),         # b|scale|shift
                pl.BlockSpec(memory_space=pltpu.MemorySpace.SMEM),  # (1+eps,)
            ],
            out_specs=pl.BlockSpec((tm, Hp), lambda i, k: (i, 0)),
            scratch_shapes=[pltpu.VMEM((tm, Fin), jnp.float32)],
        ),
        compiler_params=pltpu.CompilerParams(
            dimension_semantics=("parallel", "arbitrary"),
            vmem_limit_bytes=32 * 1024 * 1024,
        ),
        cost_estimate=cost,
    )(a_pad, x_pad, x_pad, w_pad, vec_pad, eps_scale)


# ----------------------------------------------------------------------------
# Kernel 2: merge Linear + leaky (latent), global mean pool (exact counts),
#           classification MLP (Linear -> ReLU -> BN(eval) -> Linear)
# Grid: (node tiles [arbitrary]) with a resident [G, H] pooled-sum accumulator
# ----------------------------------------------------------------------------
def _merge_pool_cls_kernel(h2_ref, pool_ref, wm_ref, wc1_ref, wc2_ref,
                           vec_ref, bc2_ref, invc_ref,
                           latent_ref, class_ref, pooled_ref):
    f32, bf16 = jnp.float32, jnp.bfloat16
    k = pl.program_id(0)
    vec = vec_ref[...]
    bm, bc1, s, t = vec[0:1], vec[1:2], vec[2:3], vec[3:4]

    xm = jnp.dot(h2_ref[...], wm_ref[...], preferred_element_type=f32) + bm
    xm = jnp.maximum(xm, 0.2 * xm)                   # leaky_relu(0.2)
    latent_ref[...] = xm.astype(latent_ref.dtype)

    @pl.when(k == 0)
    def _():
        pooled_ref[...] = jnp.zeros_like(pooled_ref)

    # exact 0/1 one-hot sum pool; mean taken with f32 inv-counts at the end
    pooled_ref[...] += jnp.dot(pool_ref[...], xm.astype(bf16),
                               preferred_element_type=f32)

    @pl.when(k == pl.num_programs(0) - 1)
    def _():
        pooled = pooled_ref[...] * invc_ref[...]     # global_mean_pool
        hc = jnp.dot(pooled.astype(bf16), wc1_ref[...],
                     preferred_element_type=f32) + bc1
        hc = jnp.maximum(hc, 0.0)                    # ReLU
        hc = hc * s + t                              # folded BatchNorm1d (eval)
        class_ref[...] = (
            jnp.dot(hc.astype(bf16), wc2_ref[...], preferred_element_type=f32)
            + bc2_ref[...]
        )


def _merge_pool_cls(h2, pool_pad, wm, wc1, wc2, vec, bc2, invc, *, tk):
    Np, Hp = h2.shape
    Gp = pool_pad.shape[0]
    Cp = wc2.shape[1]
    grid = (Np // tk,)
    cost = pl.CostEstimate(
        flops=int(2 * Np * Hp * Hp + 2 * Gp * Np * Hp + 2 * Gp * Hp * Hp
                  + 2 * Gp * Hp * Cp),
        transcendentals=0,
        bytes_accessed=int(Np * Hp * 2 + Gp * Np * 2 + 3 * Hp * Hp * 2
                           + Np * Hp * 4 + Gp * Cp * 4),
    )
    return pl.pallas_call(
        _merge_pool_cls_kernel,
        out_shape=(
            jax.ShapeDtypeStruct((Np, Hp), jnp.float32),
            jax.ShapeDtypeStruct((Gp, Cp), jnp.float32),
        ),
        grid_spec=pltpu.PrefetchScalarGridSpec(
            num_scalar_prefetch=0,
            grid=grid,
            in_specs=[
                pl.BlockSpec((tk, Hp), lambda k: (k, 0)),   # h2 tile
                pl.BlockSpec((Gp, tk), lambda k: (0, k)),   # one-hot pool cols
                pl.BlockSpec((Hp, Hp), lambda k: (0, 0)),   # W_merge
                pl.BlockSpec((Hp, Hp), lambda k: (0, 0)),   # W_cls1
                pl.BlockSpec((Hp, Cp), lambda k: (0, 0)),   # W_cls2
                pl.BlockSpec((4, Hp), lambda k: (0, 0)),    # bm|bc1|bnc_s|bnc_t
                pl.BlockSpec((1, Cp), lambda k: (0, 0)),    # b_cls2
                pl.BlockSpec((Gp, 1), lambda k: (0, 0)),    # 1/counts (f32)
            ],
            out_specs=(
                pl.BlockSpec((tk, Hp), lambda k: (k, 0)),   # latent
                pl.BlockSpec((Gp, Cp), lambda k: (0, 0)),   # class_out
            ),
            scratch_shapes=[pltpu.VMEM((Gp, Hp), jnp.float32)],
        ),
        compiler_params=pltpu.CompilerParams(
            dimension_semantics=("arbitrary",),
            vmem_limit_bytes=32 * 1024 * 1024,
        ),
        cost_estimate=cost,
    )(h2, pool_pad, wm, wc1, wc2, vec, bc2, invc)


# ----------------------------------------------------------------------------
# Wrapper: pad to lane/sublane-friendly shapes, pack params, run the 3 kernels.
# ----------------------------------------------------------------------------
@jax.jit
def gin_forward(a, x, pool_onehot, counts, params):
    N, F = x.shape
    G = pool_onehot.shape[0]
    H = params["w_merge"].shape[1]
    C = params["w_cls2"].shape[1]

    Np = _round_up(N, 128)
    Fp = _round_up(F, 128)
    Hp = _round_up(H, 128)
    Cp = _round_up(C, 128)
    Gp = _round_up(G, 8)

    bf16, f32 = jnp.bfloat16, jnp.float32

    a_pad = _pad2(a, Np, Np, bf16)                     # adjacency w/ self-loops
    x_pad = _pad2(x, Np, Fp, bf16)
    pool_pad = _pad2(pool_onehot, Gp, Np, bf16)        # exact 0/1 sum-pool
    inv_counts = jnp.where(counts > 0, 1.0 / counts, 0.0).astype(f32)
    invc_pad = _pad2(inv_counts, Gp, 1, f32)

    w1 = _pad2(params["w1"], Fp, Hp, bf16)
    w2 = _pad2(params["w2"], Hp, Hp, bf16)
    wm = _pad2(params["w_merge"], Hp, Hp, bf16)
    wc1 = _pad2(params["w_cls1"], Hp, Hp, bf16)
    wc2 = _pad2(params["w_cls2"], Hp, Cp, bf16)

    vec1 = _pad2(jnp.concatenate(
        [params["b1"], params["bn1_scale"], params["bn1_shift"]], axis=0),
        3, Hp, f32)
    vec2 = _pad2(jnp.concatenate(
        [params["b2"], params["bn2_scale"], params["bn2_shift"]], axis=0),
        3, Hp, f32)
    vec3 = _pad2(jnp.concatenate(
        [params["b_merge"], params["b_cls1"],
         params["bnc_scale"], params["bnc_shift"]], axis=0),
        4, Hp, f32)
    bc2 = _pad2(params["b_cls2"], 1, Cp, f32)

    eps1 = jnp.reshape(1.0 + params["eps1"], (1,)).astype(f32)
    eps2 = jnp.reshape(1.0 + params["eps2"], (1,)).astype(f32)

    # Generation-safe tiles: TM <= 256 (v7x 64 MiB VMEM), TK <= 512 (256-aligned
    # contractions fill the 2x256 MXU on v6e/v7x; 128 is already full on v5e).
    tm = _pick_tile(Np, (256, 128))
    tk = _pick_tile(Np, (512, 256, 128))

    h1 = _gin_conv_layer(a_pad, x_pad, w1, vec1, eps1, tm=tm, tk=tk,
                         out_dtype=bf16)
    h2 = _gin_conv_layer(a_pad, h1, w2, vec2, eps2, tm=tm, tk=tk,
                         out_dtype=bf16)
    latent_pad, class_pad = _merge_pool_cls(h2, pool_pad, wm, wc1, wc2,
                                            vec3, bc2, invc_pad, tk=tk)
    return latent_pad[:N, :H], class_pad[:G, :C]


# ----------------------------------------------------------------------------
# Pure-JAX reference mirroring the kernels' bf16-operand / f32-accumulate math.
# ----------------------------------------------------------------------------
def gin_reference(a, x, pool_onehot, counts, params):
    bf16, f32 = jnp.bfloat16, jnp.float32
    mm = lambda p, q: jnp.dot(p.astype(bf16), q.astype(bf16),
                              preferred_element_type=f32)
    leaky = lambda v: jnp.maximum(v, 0.2 * v)
    rbf = lambda v: v.astype(bf16).astype(f32)

    xb = rbf(x)
    pre1 = (1.0 + params["eps1"]) * xb + mm(a, x)
    h1 = leaky((mm(pre1, params["w1"]) + params["b1"]) * params["bn1_scale"]
               + params["bn1_shift"])
    h1b = rbf(h1)
    pre2 = (1.0 + params["eps2"]) * h1b + mm(a, h1b)
    h2 = leaky((mm(pre2, params["w2"]) + params["b2"]) * params["bn2_scale"]
               + params["bn2_shift"])
    h2b = rbf(h2)
    xm = leaky(mm(h2b, params["w_merge"]) + params["b_merge"])
    inv_counts = jnp.where(counts > 0, 1.0 / counts, 0.0)
    pooled = mm(pool_onehot, xm) * inv_counts
    hc = jnp.maximum(mm(pooled, params["w_cls1"]) + params["b_cls1"], 0.0)
    hc = hc * params["bnc_scale"] + params["bnc_shift"]
    class_out = mm(hc, params["w_cls2"]) + params["b_cls2"]
    return xm, class_out


# ----------------------------------------------------------------------------
# Deterministic parameter / graph construction (shapes from the module).
# ----------------------------------------------------------------------------
def make_params(key, num_features_exp, hidden_channels, num_classes):
    ks = jax.random.split(key, 8)

    def lin(k, fan_in, fan_out):
        bound = 1.0 / (fan_in ** 0.5)
        kw, kb = jax.random.split(k)
        w = jax.random.uniform(kw, (fan_in, fan_out), jnp.float32, -bound, bound)
        b = jax.random.uniform(kb, (1, fan_out), jnp.float32, -bound, bound)
        return w, b

    def bn(k, c):
        # eval-mode fold of arbitrary running stats:
        #   scale = gamma/sqrt(var+eps), shift = beta - mean*scale
        kg, kb, km, kv = jax.random.split(k, 4)
        gamma = 1.0 + 0.1 * jax.random.normal(kg, (1, c), jnp.float32)
        beta = 0.1 * jax.random.normal(kb, (1, c), jnp.float32)
        mean = 0.05 * jax.random.normal(km, (1, c), jnp.float32)
        var = 1.0 + 0.1 * jnp.abs(jax.random.normal(kv, (1, c), jnp.float32))
        scale = gamma / jnp.sqrt(var + 1e-5)
        shift = beta - mean * scale
        return scale, shift

    w1, b1 = lin(ks[0], num_features_exp, hidden_channels)
    w2, b2 = lin(ks[1], hidden_channels, hidden_channels)
    wm, bm = lin(ks[2], hidden_channels, hidden_channels)
    wc1, bc1 = lin(ks[3], hidden_channels, hidden_channels)
    wc2, bc2 = lin(ks[4], hidden_channels, num_classes)
    bn1s, bn1t = bn(ks[5], hidden_channels)
    bn2s, bn2t = bn(ks[6], hidden_channels)
    bncs, bnct = bn(ks[7], hidden_channels)

    return dict(
        eps1=jnp.float32(0.0),   # GINConv(train_eps=True) init value
        eps2=jnp.float32(0.0),
        w1=w1, b1=b1, bn1_scale=bn1s, bn1_shift=bn1t,
        w2=w2, b2=b2, bn2_scale=bn2s, bn2_shift=bn2t,
        w_merge=wm, b_merge=bm,
        w_cls1=wc1, b_cls1=bc1, bnc_scale=bncs, bnc_shift=bnct,
        w_cls2=wc2, b_cls2=bc2,
    )


def build_graph(num_nodes, num_graphs):
    """Ring graphs -> dense adjacency WITH self-loops (the reference forward
    calls add_self_loops explicitly), exact 0/1 pool one-hot, per-graph counts."""
    nodes_per_graph = num_nodes // num_graphs
    a = np.zeros((num_nodes, num_nodes), np.float32)
    batch = np.zeros((num_nodes,), np.int32)
    for g in range(num_graphs):
        off = g * nodes_per_graph
        for i in range(nodes_per_graph):
            src = off + i
            dst = off + (i + 1) % nodes_per_graph
            a[dst, src] = 1.0
            a[src, dst] = 1.0
            batch[src] = g
    a += np.eye(num_nodes, dtype=np.float32)          # add_self_loops
    one_hot = (batch[None, :] == np.arange(num_graphs)[:, None]).astype(np.float32)
    counts = one_hot.sum(axis=1, keepdims=True)
    return jnp.asarray(a), jnp.asarray(one_hot), jnp.asarray(counts)


if __name__ == "__main__":
    NUM_NODES = 16
    NUM_GRAPHS = 2
    NUM_FEATURES_EXP = 8
    HIDDEN_CHANNELS = 32
    NUM_CLASSES = 4

    key = jax.random.PRNGKey(0)
    k_x, k_p = jax.random.split(key)

    x = jax.random.normal(k_x, (NUM_NODES, NUM_FEATURES_EXP), jnp.float32)
    a, pool_onehot, counts = build_graph(NUM_NODES, NUM_GRAPHS)
    params = make_params(k_p, NUM_FEATURES_EXP, HIDDEN_CHANNELS, NUM_CLASSES)

    latent, class_out = gin_forward(a, x, pool_onehot, counts, params)
    jax.block_until_ready((latent, class_out))

    assert latent.shape == (NUM_NODES, HIDDEN_CHANNELS)
    assert class_out.shape == (NUM_GRAPHS, NUM_CLASSES)

    ref_latent, ref_class = gin_reference(a, x, pool_onehot, counts, params)
    assert bool(jnp.all(jnp.isfinite(latent))) and bool(jnp.all(jnp.isfinite(class_out)))
    assert bool(jnp.allclose(latent, ref_latent, rtol=2e-2, atol=2e-2))
    assert bool(jnp.allclose(class_out, ref_class, rtol=2e-2, atol=2e-2))

    print("KERNEL_OK")
</pallas_src>

<mosaic_0001>
module attributes {stable_mosaic.version = 11 : i64} {
  func.func @_gin_conv_kernel(%arg0: i32, %arg1: i32, %arg2: memref<128x128xbf16, #tpu.memory_space<vmem>>, %arg3: memref<128x128xbf16, #tpu.memory_space<vmem>>, %arg4: memref<128x128xbf16, #tpu.memory_space<vmem>>, %arg5: memref<128x128xbf16, #tpu.memory_space<vmem>>, %arg6: memref<3x128xf32, #tpu.memory_space<vmem>>, %arg7: memref<1xf32, #tpu.memory_space<smem>>, %arg8: memref<128x128xbf16, #tpu.memory_space<vmem>>, %arg9: memref<128x128xf32, #tpu.memory_space<vmem>>) attributes {dimension_semantics = [#tpu.dimension_semantics<parallel>, #tpu.dimension_semantics<arbitrary>], iteration_bounds = array<i64: 1, 1>, scalar_prefetch = 0 : i64, scratch_operands = 1 : i64, tpu.core_type = #tpu.core_type<tc>, window_params = [{transform_indices = @transform_0, window_bounds = array<i64: 128, 128>}, {transform_indices = @transform_1, window_bounds = array<i64: 128, 128>}, {transform_indices = @transform_2, window_bounds = array<i64: 128, 128>}, {pipeline_mode = #tpu.pipeline_mode<synchronous>, transform_indices = @transform_3, window_bounds = array<i64: 128, 128>}, {pipeline_mode = #tpu.pipeline_mode<synchronous>, transform_indices = @transform_4, window_bounds = array<i64: 3, 128>}, {transform_indices = @transform_5, window_bounds = array<i64: 1>}, {transform_indices = @transform_6, window_bounds = array<i64: 128, 128>}]} {
    %c0_i32 = arith.constant 0 : i32
    %0 = arith.cmpi eq, %arg1, %c0_i32 : i32
    %1 = arith.extui %0 : i1 to i32
    %c0_i32_0 = arith.constant 0 : i32
    %2 = arith.cmpi ne, %1, %c0_i32_0 : i32
    scf.if %2 {
      %c0_10 = arith.constant 0 : index
      %12 = memref.load %arg7[%c0_10] : memref<1xf32, #tpu.memory_space<smem>>
      %c0_11 = arith.constant 0 : index
      %c0_12 = arith.constant 0 : index
      %13 = vector.load %arg4[%c0_11, %c0_12] : memref<128x128xbf16, #tpu.memory_space<vmem>>, vector<128x128xbf16>
      %14 = arith.extf %13 : vector<128x128xbf16> to vector<128x128xf32>
      %15 = vector.broadcast %12 : f32 to vector<128x128xf32>
      %16 = arith.mulf %15, %14 : vector<128x128xf32>
      %c0_13 = arith.constant 0 : index
      %c0_14 = arith.constant 0 : index
      %17 = vector.load %arg9[%c0_13, %c0_14] : memref<128x128xf32, #tpu.memory_space<vmem>>, vector<128x128xf32>
      tpu.vector_store %arg9[%c0_13, %c0_14], %16 {strides = array<i32>} : memref<128x128xf32, #tpu.memory_space<vmem>>, vector<128x128xf32>,
    } else {
    }
    %c0 = arith.constant 0 : index
    %c0_1 = arith.constant 0 : index
    %3 = vector.load %arg9[%c0, %c0_1] : memref<128x128xf32, #tpu.memory_space<vmem>>, vector<128x128xf32>
    %c0_2 = arith.constant 0 : index
    %c0_3 = arith.constant 0 : index
    %4 = vector.load %arg2[%c0_2, %c0_3] : memref<128x128xbf16, #tpu.memory_space<vmem>>, vector<128x128xbf16>
    %c0_4 = arith.constant 0 : index
    %c0_5 = arith.constant 0 : index
    %5 = vector.load %arg3[%c0_4, %c0_5] : memref<128x128xbf16, #tpu.memory_space<vmem>>, vector<128x128xbf16>
    %cst = arith.constant dense<0.000000e+00> : vector<128x128xf32>
    %6 = tpu.matmul %4, %5, %cst {dimension_numbers = #tpu.dot_dimension_numbers<[1], [0], [0], [1], [0, 0, 1, 1], [], []>} : vector<128x128xbf16>, vector<128x128xbf16>, vector<128x128xf32> -> vector<128x128xf32>
    %7 = arith.addf %3, %6 : vector<128x128xf32>
    %c0_6 = arith.constant 0 : index
    %c0_7 = arith.constant 0 : index
    %8 = vector.load %arg9[%c0_6, %c0_7] : memref<128x128xf32, #tpu.memory_space<vmem>>, vector<128x128xf32>
    tpu.vector_store %arg9[%c0_6, %c0_7], %7 {strides = array<i32>} : memref<128x128xf32, #tpu.memory_space<vmem>>, vector<128x128xf32>,
    %c0_i32_8 = arith.constant 0 : i32
    %9 = arith.cmpi eq, %arg1, %c0_i32_8 : i32
    %10 = arith.extui %9 : i1 to i32
    %c0_i32_9 = arith.constant 0 : i32
    %11 = arith.cmpi ne, %10, %c0_i32_9 : i32
    scf.if %11 {
      %c0_10 = arith.constant 0 : index
      %c0_11 = arith.constant 0 : index
      %12 = vector.load %arg6[%c0_10, %c0_11] : memref<3x128xf32, #tpu.memory_space<vmem>>, vector<3x128xf32>
      %13 = vector.extract_strided_slice %12 {offsets = [0, 0], sizes = [1, 128], strides = [1, 1]} : vector<3x128xf32> to vector<1x128xf32>
      %14 = vector.extract_strided_slice %12 {offsets = [1, 0], sizes = [1, 128], strides = [1, 1]} : vector<3x128xf32> to vector<1x128xf32>
      %15 = vector.extract_strided_slice %12 {offsets = [2, 0], sizes = [1, 128], strides = [1, 1]} : vector<3x128xf32> to vector<1x128xf32>
      %c0_12 = arith.constant 0 : index
      %c0_13 = arith.constant 0 : index
      %16 = vector.load %arg9[%c0_12, %c0_13] : memref<128x128xf32, #tpu.memory_space<vmem>>, vector<128x128xf32>
      %17 = arith.truncf %16 : vector<128x128xf32> to vector<128x128xbf16>
      %c0_14 = arith.constant 0 : index
      %c0_15 = arith.constant 0 : index
      %18 = vector.load %arg5[%c0_14, %c0_15] : memref<128x128xbf16, #tpu.memory_space<vmem>>, vector<128x128xbf16>
      %cst_16 = arith.constant dense<0.000000e+00> : vector<128x128xf32>
      %19 = tpu.matmul %17, %18, %cst_16 {dimension_numbers = #tpu.dot_dimension_numbers<[1], [0], [0], [1], [0, 0, 1, 1], [], []>} : vector<128x128xbf16>, vector<128x128xbf16>, vector<128x128xf32> -> vector<128x128xf32>
      %20 = vector.broadcast %13 : vector<1x128xf32> to vector<128x128xf32>
      %21 = arith.addf %19, %20 : vector<128x128xf32>
      %22 = vector.broadcast %14 : vector<1x128xf32> to vector<128x128xf32>
      %23 = arith.mulf %21, %22 : vector<128x128xf32>
      %24 = vector.broadcast %15 : vector<1x128xf32> to vector<128x128xf32>
      %25 = arith.addf %23, %24 : vector<128x128xf32>
      %cst_17 = arith.constant 2.000000e-01 : f32
      %26 = vector.broadcast %cst_17 : f32 to vector<128x128xf32>
      %27 = arith.mulf %26, %25 : vector<128x128xf32>
      %28 = arith.maximumf %25, %27 : vector<128x128xf32>
      %29 = arith.truncf %28 : vector<128x128xf32> to vector<128x128xbf16>
      %c0_18 = arith.constant 0 : index
      %c0_19 = arith.constant 0 : index
      %30 = vector.load %arg8[%c0_18, %c0_19] : memref<128x128xbf16, #tpu.memory_space<vmem>>, vector<128x128xbf16>
      tpu.vector_store %arg8[%c0_18, %c0_19], %29 {strides = array<i32>} : memref<128x128xbf16, #tpu.memory_space<vmem>>, vector<128x128xbf16>,
    } else {
    }
    return
  }
  func.func @transform_0(%arg0: i32, %arg1: i32) -> (i32, i32) {
    %c0_i32 = arith.constant 0 : i32
    return %arg0, %arg1 : i32, i32
  }
  func.func @transform_1(%arg0: i32, %arg1: i32) -> (i32, i32) {
    %c0_i32 = arith.constant 0 : i32
    %c0_i32_0 = arith.constant 0 : i32
    return %arg1, %c0_i32 : i32, i32
  }
  func.func @transform_2(%arg0: i32, %arg1: i32) -> (i32, i32) {
    %c0_i32 = arith.constant 0 : i32
    %c0_i32_0 = arith.constant 0 : i32
    return %arg0, %c0_i32 : i32, i32
  }
  func.func @transform_3(%arg0: i32, %arg1: i32) -> (i32, i32) {
    %c0_i32 = arith.constant 0 : i32
    %c0_i32_0 = arith.constant 0 : i32
    %c0_i32_1 = arith.constant 0 : i32
    return %c0_i32, %c0_i32_0 : i32, i32
  }
  func.func @transform_4(%arg0: i32, %arg1: i32) -> (i32, i32) {
    %c0_i32 = arith.constant 0 : i32
    %c0_i32_0 = arith.constant 0 : i32
    %c0_i32_1 = arith.constant 0 : i32
    return %c0_i32, %c0_i32_0 : i32, i32
  }
  func.func @transform_5(%arg0: i32, %arg1: i32) -> i32 {
    %c0_i32 = arith.constant 0 : i32
    %c0_i32_0 = arith.constant 0 : i32
    return %c0_i32 : i32
  }
  func.func @transform_6(%arg0: i32, %arg1: i32) -> (i32, i32) {
    %c0_i32 = arith.constant 0 : i32
    %c0_i32_0 = arith.constant 0 : i32
    return %arg0, %c0_i32 : i32, i32
  }
}

module attributes {stable_mosaic.version = 11 : i64} {
  func.func @_merge_pool_cls_kernel(%arg0: i32, %arg1: memref<128x128xbf16, #tpu.memory_space<vmem>>, %arg2: memref<8x128xbf16, #tpu.memory_space<vmem>>, %arg3: memref<128x128xbf16, #tpu.memory_space<vmem>>, %arg4: memref<128x128xbf16, #tpu.memory_space<vmem>>, %arg5: memref<128x128xbf16, #tpu.memory_space<vmem>>, %arg6: memref<4x128xf32, #tpu.memory_space<vmem>>, %arg7: memref<1x128xf32, #tpu.memory_space<vmem>>, %arg8: memref<8x1xf32, #tpu.memory_space<vmem>>, %arg9: memref<128x128xf32, #tpu.memory_space<vmem>>, %arg10: memref<8x128xf32, #tpu.memory_space<vmem>>, %arg11: memref<8x128xf32, #tpu.memory_space<vmem>>) attributes {dimension_semantics = [#tpu.dimension_semantics<arbitrary>], iteration_bounds = array<i64: 1>, scalar_prefetch = 0 : i64, scratch_operands = 1 : i64, tpu.core_type = #tpu.core_type<tc>, window_params = [{transform_indices = @transform_0, window_bounds = array<i64: 128, 128>}, {transform_indices = @transform_1, window_bounds = array<i64: 8, 128>}, {pipeline_mode = #tpu.pipeline_mode<synchronous>, transform_indices = @transform_2, window_bounds = array<i64: 128, 128>}, {pipeline_mode = #tpu.pipeline_mode<synchronous>, transform_indices = @transform_3, window_bounds = array<i64: 128, 128>}, {pipeline_mode = #tpu.pipeline_mode<synchronous>, transform_indices = @transform_4, window_bounds = array<i64: 128, 128>}, {pipeline_mode = #tpu.pipeline_mode<synchronous>, transform_indices = @transform_5, window_bounds = array<i64: 4, 128>}, {pipeline_mode = #tpu.pipeline_mode<synchronous>, transform_indices = @transform_6, window_bounds = array<i64: 1, 128>}, {pipeline_mode = #tpu.pipeline_mode<synchronous>, transform_indices = @transform_7, window_bounds = array<i64: 8, 1>}, {transform_indices = @transform_8, window_bounds = array<i64: 128, 128>}, {pipeline_mode = #tpu.pipeline_mode<synchronous>, transform_indices = @transform_9, window_bounds = array<i64: 8, 128>}]} {
    %c0 = arith.constant 0 : index
    %c0_0 = arith.constant 0 : index
    %0 = vector.load %arg6[%c0, %c0_0] : memref<4x128xf32, #tpu.memory_space<vmem>>, vector<4x128xf32>
    %1 = vector.extract_strided_slice %0 {offsets = [0, 0], sizes = [1, 128], strides = [1, 1]} : vector<4x128xf32> to vector<1x128xf32>
    %2 = vector.extract_strided_slice %0 {offsets = [1, 0], sizes = [1, 128], strides = [1, 1]} : vector<4x128xf32> to vector<1x128xf32>
    %3 = vector.extract_strided_slice %0 {offsets = [2, 0], sizes = [1, 128], strides = [1, 1]} : vector<4x128xf32> to vector<1x128xf32>
    %4 = vector.extract_strided_slice %0 {offsets = [3, 0], sizes = [1, 128], strides = [1, 1]} : vector<4x128xf32> to vector<1x128xf32>
    %c0_1 = arith.constant 0 : index
    %c0_2 = arith.constant 0 : index
    %5 = vector.load %arg1[%c0_1, %c0_2] : memref<128x128xbf16, #tpu.memory_space<vmem>>, vector<128x128xbf16>
    %c0_3 = arith.constant 0 : index
    %c0_4 = arith.constant 0 : index
    %6 = vector.load %arg3[%c0_3, %c0_4] : memref<128x128xbf16, #tpu.memory_space<vmem>>, vector<128x128xbf16>
    %cst = arith.constant dense<0.000000e+00> : vector<128x128xf32>
    %7 = tpu.matmul %5, %6, %cst {dimension_numbers = #tpu.dot_dimension_numbers<[1], [0], [0], [1], [0, 0, 1, 1], [], []>} : vector<128x128xbf16>, vector<128x128xbf16>, vector<128x128xf32> -> vector<128x128xf32>
    %8 = vector.broadcast %1 : vector<1x128xf32> to vector<128x128xf32>
    %9 = arith.addf %7, %8 : vector<128x128xf32>
    %cst_5 = arith.constant 2.000000e-01 : f32
    %10 = vector.broadcast %cst_5 : f32 to vector<128x128xf32>
    %11 = arith.mulf %10, %9 : vector<128x128xf32>
    %12 = arith.maximumf %9, %11 : vector<128x128xf32>
    %c0_6 = arith.constant 0 : index
    %c0_7 = arith.constant 0 : index
    %13 = vector.load %arg9[%c0_6, %c0_7] : memref<128x128xf32, #tpu.memory_space<vmem>>, vector<128x128xf32>
    tpu.vector_store %arg9[%c0_6, %c0_7], %12 {strides = array<i32>} : memref<128x128xf32, #tpu.memory_space<vmem>>, vector<128x128xf32>,
    %c0_i32 = arith.constant 0 : i32
    %14 = arith.cmpi eq, %arg0, %c0_i32 : i32
    %15 = arith.extui %14 : i1 to i32
    %c0_i32_8 = arith.constant 0 : i32
    %16 = arith.cmpi ne, %15, %c0_i32_8 : i32
    scf.if %16 {
      %cst_18 = arith.constant 0.000000e+00 : f32
      %26 = vector.broadcast %cst_18 : f32 to vector<8x128xf32>
      %c0_19 = arith.constant 0 : index
      %c0_20 = arith.constant 0 : index
      %27 = vector.load %arg11[%c0_19, %c0_20] : memref<8x128xf32, #tpu.memory_space<vmem>>, vector<8x128xf32>
      tpu.vector_store %arg11[%c0_19, %c0_20], %26 {strides = array<i32>} : memref<8x128xf32, #tpu.memory_space<vmem>>, vector<8x128xf32>,
    } else {
    }
    %c0_9 = arith.constant 0 : index
    %c0_10 = arith.constant 0 : index
    %17 = vector.load %arg11[%c0_9, %c0_10] : memref<8x128xf32, #tpu.memory_space<vmem>>, vector<8x128xf32>
    %c0_11 = arith.constant 0 : index
    %c0_12 = arith.constant 0 : index
    %18 = vector.load %arg2[%c0_11, %c0_12] : memref<8x128xbf16, #tpu.memory_space<vmem>>, vector<8x128xbf16>
    %19 = arith.truncf %12 : vector<128x128xf32> to vector<128x128xbf16>
    %cst_13 = arith.constant dense<0.000000e+00> : vector<8x128xf32>
    %20 = tpu.matmul %18, %19, %cst_13 {dimension_numbers = #tpu.dot_dimension_numbers<[1], [0], [0], [1], [0, 0, 1, 1], [], []>} : vector<8x128xbf16>, vector<128x128xbf16>, vector<8x128xf32> -> vector<8x128xf32>
    %21 = arith.addf %17, %20 : vector<8x128xf32>
    %c0_14 = arith.constant 0 : index
    %c0_15 = arith.constant 0 : index
    %22 = vector.load %arg11[%c0_14, %c0_15] : memref<8x128xf32, #tpu.memory_space<vmem>>, vector<8x128xf32>
    tpu.vector_store %arg11[%c0_14, %c0_15], %21 {strides = array<i32>} : memref<8x128xf32, #tpu.memory_space<vmem>>, vector<8x128xf32>,
    %c0_i32_16 = arith.constant 0 : i32
    %23 = arith.cmpi eq, %arg0, %c0_i32_16 : i32
    %24 = arith.extui %23 : i1 to i32
    %c0_i32_17 = arith.constant 0 : i32
    %25 = arith.cmpi ne, %24, %c0_i32_17 : i32
    scf.if %25 {
      %c0_18 = arith.constant 0 : index
      %c0_19 = arith.constant 0 : index
      %26 = vector.load %arg11[%c0_18, %c0_19] : memref<8x128xf32, #tpu.memory_space<vmem>>, vector<8x128xf32>
      %c0_20 = arith.constant 0 : index
      %c0_21 = arith.constant 0 : index
      %27 = vector.load %arg8[%c0_20, %c0_21] : memref<8x1xf32, #tpu.memory_space<vmem>>, vector<8x1xf32>
      %28 = vector.broadcast %27 : vector<8x1xf32> to vector<8x128xf32>
      %29 = arith.mulf %26, %28 : vector<8x128xf32>
      %30 = arith.truncf %29 : vector<8x128xf32> to vector<8x128xbf16>
      %c0_22 = arith.constant 0 : index
      %c0_23 = arith.constant 0 : index
      %31 = vector.load %arg4[%c0_22, %c0_23] : memref<128x128xbf16, #tpu.memory_space<vmem>>, vector<128x128xbf16>
      %cst_24 = arith.constant dense<0.000000e+00> : vector<8x128xf32>
      %32 = tpu.matmul %30, %31, %cst_24 {dimension_numbers = #tpu.dot_dimension_numbers<[1], [0], [0], [1], [0, 0, 1, 1], [], []>} : vector<8x128xbf16>, vector<128x128xbf16>, vector<8x128xf32> -> vector<8x128xf32>
      %33 = vector.broadcast %2 : vector<1x128xf32> to vector<8x128xf32>
      %34 = arith.addf %32, %33 : vector<8x128xf32>
      %cst_25 = arith.constant 0.000000e+00 : f32
      %35 = vector.broadcast %cst_25 : f32 to vector<8x128xf32>
      %36 = arith.maximumf %34, %35 : vector<8x128xf32>
      %37 = vector.broadcast %3 : vector<1x128xf32> to vector<8x128xf32>
      %38 = arith.mulf %36, %37 : vector<8x128xf32>
      %39 = vector.broadcast %4 : vector<1x128xf32> to vector<8x128xf32>
      %40 = arith.addf %38, %39 : vector<8x128xf32>
      %41 = arith.truncf %40 : vector<8x128xf32> to vector<8x128xbf16>
      %c0_26 = arith.constant 0 : index
      %c0_27 = arith.constant 0 : index
      %42 = vector.load %arg5[%c0_26, %c0_27] : memref<128x128xbf16, #tpu.memory_space<vmem>>, vector<128x128xbf16>
      %cst_28 = arith.constant dense<0.000000e+00> : vector<8x128xf32>
      %43 = tpu.matmul %41, %42, %cst_28 {dimension_numbers = #tpu.dot_dimension_numbers<[1], [0], [0], [1], [0, 0, 1, 1], [], []>} : vector<8x128xbf16>, vector<128x128xbf16>, vector<8x128xf32> -> vector<8x128xf32>
      %c0_29 = arith.constant 0 : index
      %c0_30 = arith.constant 0 : index
      %44 = vector.load %arg7[%c0_29, %c0_30] : memref<1x128xf32, #tpu.memory_space<vmem>>, vector<1x128xf32>
      %45 = vector.broadcast %44 : vector<1x128xf32> to vector<8x128xf32>
      %46 = arith.addf %43, %45 : vector<8x128xf32>
      %c0_31 = arith.constant 0 : index
      %c0_32 = arith.constant 0 : index
      %47 = vector.load %arg10[%c0_31, %c0_32] : memref<8x128xf32, #tpu.memory_space<vmem>>, vector<8x128xf32>
      tpu.vector_store %arg10[%c0_31, %c0_32], %46 {strides = array<i32>} : memref<8x128xf32, #tpu.memory_space<vmem>>, vector<8x128xf32>,
    } else {
    }
    return
  }
  func.func @transform_0(%arg0: i32) -> (i32, i32) {
    %c0_i32 = arith.constant 0 : i32
    %c0_i32_0 = arith.constant 0 : i32
    return %arg0, %c0_i32 : i32, i32
  }
  func.func @transform_1(%arg0: i32) -> (i32, i32) {
    %c0_i32 = arith.constant 0 : i32
    %c0_i32_0 = arith.constant 0 : i32
    return %c0_i32, %arg0 : i32, i32
  }
  func.func @transform_2(%arg0: i32) -> (i32, i32) {
    %c0_i32 = arith.constant 0 : i32
    %c0_i32_0 = arith.constant 0 : i32
    %c0_i32_1 = arith.constant 0 : i32
    return %c0_i32, %c0_i32_0 : i32, i32
  }
  func.func @transform_3(%arg0: i32) -> (i32, i32) {
    %c0_i32 = arith.constant 0 : i32
    %c0_i32_0 = arith.constant 0 : i32
    %c0_i32_1 = arith.constant 0 : i32
    return %c0_i32, %c0_i32_0 : i32, i32
  }
  func.func @transform_4(%arg0: i32) -> (i32, i32) {
    %c0_i32 = arith.constant 0 : i32
    %c0_i32_0 = arith.constant 0 : i32
    %c0_i32_1 = arith.constant 0 : i32
    return %c0_i32, %c0_i32_0 : i32, i32
  }
  func.func @transform_5(%arg0: i32) -> (i32, i32) {
    %c0_i32 = arith.constant 0 : i32
    %c0_i32_0 = arith.constant 0 : i32
    %c0_i32_1 = arith.constant 0 : i32
    return %c0_i32, %c0_i32_0 : i32, i32
  }
  func.func @transform_6(%arg0: i32) -> (i32, i32) {
    %c0_i32 = arith.constant 0 : i32
    %c0_i32_0 = arith.constant 0 : i32
    %c0_i32_1 = arith.constant 0 : i32
    return %c0_i32, %c0_i32_0 : i32, i32
  }
  func.func @transform_7(%arg0: i32) -> (i32, i32) {
    %c0_i32 = arith.constant 0 : i32
    %c0_i32_0 = arith.constant 0 : i32
    %c0_i32_1 = arith.constant 0 : i32
    return %c0_i32, %c0_i32_0 : i32, i32
  }
  func.func @transform_8(%arg0: i32) -> (i32, i32) {
    %c0_i32 = arith.constant 0 : i32
    %c0_i32_0 = arith.constant 0 : i32
    return %arg0, %c0_i32 : i32, i32
  }
  func.func @transform_9(%arg0: i32) -> (i32, i32) {
    %c0_i32 = arith.constant 0 : i32
    %c0_i32_0 = arith.constant 0 : i32
    %c0_i32_1 = arith.constant 0 : i32
    return %c0_i32, %c0_i32_0 : i32, i32
  }
}

</mosaic_0001>

<llo_original>
// kernel: gin_forward.5
$region0: #{gin_forward.5}
  #allocation0 [shape = 'u32[]', space=smem, size = 0x4, offset = 0x4, fixed_abs, tag = 'smem constant byte address 0x4 - core index']
  #allocation1 [shape = 'u32[72,128]{1,0:T(1,128)}', space=vmem, size = 0x9000, scoped, tag = 'internal scratch']
  #allocation2 [shape = 'f32[8,128]{1,0:T(8,128)}', space=vmem, size = 0x1000, scoped, tag = 'scratch operand']
  %s0 = inlined_call_operand.vmem [shape: bf16[128,128], index: 0, kind: input, shape index: {}]
  %s1 = inlined_call_operand.vmem [shape: bf16[8,128], index: 1, kind: input, shape index: {}]
  %s2 = inlined_call_operand.vmem [shape: bf16[128,128], index: 2, kind: input, shape index: {}]
  %s3 = inlined_call_operand.vmem [shape: bf16[128,128], index: 3, kind: input, shape index: {}]
  %s4 = inlined_call_operand.vmem [shape: bf16[128,128], index: 4, kind: input, shape index: {}]
  %s5 = inlined_call_operand.vmem [shape: f32[4,128], index: 5, kind: input, shape index: {}]
  %s6 = inlined_call_operand.vmem [shape: f32[1,128], index: 6, kind: input, shape index: {}]
  %s7 = inlined_call_operand.vmem [shape: f32[8,1], index: 7, kind: input, shape index: {}]
  %s8 = inlined_call_operand.vmem [shape: f32[128,128], index: 8, kind: output, shape index: {0}]
  %s9 = inlined_call_operand.vmem [shape: f32[8,128], index: 9, kind: output, shape index: {1}]
  %10 = xla_tuple %s8, %s9
  %s11 = sld [smem:[#allocation0]]
  $region58: #{gin_forward.5} parent=0
    _
  %s13 = ssub.s32 1, %s11
  %s14 = scalar_select 0, %s13, %s11
  // Predicated region
  $region2: #{gin_forward.5} parent=0 // pred_check
    _
  $region3: #{gin_forward.5} parent=0 // pred_check_branch
    %16 = sbr.rel (0) target = $region5
  $region4: #{gin_forward.5} parent=0 // pred_region
    _
  $region5: #{gin_forward.5} parent=0 // pred_fallthru
    _
  // Predicated region
  $region6: #{gin_forward.5} parent=0 // pred_check
    _
  $region7: #{gin_forward.5} parent=0 // pred_check_branch
    %18 = sbr.rel (0) target = $region9
  $region8: #{gin_forward.5} parent=0 // pred_region
    _
  $region9: #{gin_forward.5} parent=0 // pred_fallthru
    _
  // Predicated region
  $region10: #{gin_forward.5} parent=0 // pred_check
    _
  $region11: #{gin_forward.5} parent=0 // pred_check_branch
    %20 = sbr.rel (0) target = $region13
  $region12: #{gin_forward.5} parent=0 // pred_region
    _
  $region13: #{gin_forward.5} parent=0 // pred_fallthru
    _
  // Predicated region
  $region14: #{gin_forward.5} parent=0 // pred_check
    _
  $region15: #{gin_forward.5} parent=0 // pred_check_branch
    %22 = sbr.rel (0) target = $region17
  $region16: #{gin_forward.5} parent=0 // pred_region
    _
  $region17: #{gin_forward.5} parent=0 // pred_fallthru
    _
  // Predicated region
  $region18: #{gin_forward.5} parent=0 // pred_check
    _
  $region19: #{gin_forward.5} parent=0 // pred_check_branch
    %24 = sbr.rel (0) target = $region21
  $region20: #{gin_forward.5} parent=0 // pred_region
    _
  $region21: #{gin_forward.5} parent=0 // pred_fallthru
    _
  // Predicated region
  $region22: #{gin_forward.5} parent=0 // pred_check
    _
  $region23: #{gin_forward.5} parent=0 // pred_check_branch
    %26 = sbr.rel (0) target = $region25
  $region24: #{gin_forward.5} parent=0 // pred_region
    _
  $region25: #{gin_forward.5} parent=0 // pred_fallthru
    _
  // Predicated region
  $region26: #{gin_forward.5} parent=0 // pred_check
    _
  $region27: #{gin_forward.5} parent=0 // pred_check_branch
    %28 = sbr.rel (0) target = $region29
  $region28: #{gin_forward.5} parent=0 // pred_region
    _
  $region29: #{gin_forward.5} parent=0 // pred_fallthru
    _
  // Predicated region
  $region30: #{gin_forward.5} parent=0 // pred_check
    _
  $region31: #{gin_forward.5} parent=0 // pred_check_branch
    %30 = sbr.rel (0) target = $region33
  $region32: #{gin_forward.5} parent=0 // pred_region
    _
  $region33: #{gin_forward.5} parent=0 // pred_fallthru
    _
  %v31 = vld [vmem:[%s5] sm:$0xf]
  %v32 = vld [vmem:[%s0] sm:$0xf]
  %v33 = vld [vmem:[%s0 + $0x4] sm:$0xf]
  %v34 = vld [vmem:[%s0 + $0x8] sm:$0xf]
  %v35 = vld [vmem:[%s0 + $0xc] sm:$0xf]
  %v36 = vld [vmem:[%s0 + $0x10] sm:$0xf]
  %v37 = vld [vmem:[%s0 + $0x14] sm:$0xf]
  %v38 = vld [vmem:[%s0 + $0x18] sm:$0xf]
  %v39 = vld [vmem:[%s0 + $0x1c] sm:$0xf]
  %v40 = vld [vmem:[%s0 + $0x20] sm:$0xf]
  %v41 = vld [vmem:[%s0 + $0x24] sm:$0xf]
  %v42 = vld [vmem:[%s0 + $0x28] sm:$0xf]
  %v43 = vld [vmem:[%s0 + $0x2c] sm:$0xf]
  %v44 = vld [vmem:[%s0 + $0x30] sm:$0xf]
  %v45 = vld [vmem:[%s0 + $0x34] sm:$0xf]
  %v46 = vld [vmem:[%s0 + $0x38] sm:$0xf]
  %v47 = vld [vmem:[%s0 + $0x3c] sm:$0xf]
  %v48 = vld [vmem:[%s2] sm:$0xf]
  %v49 = vld [vmem:[%s2 + $0x4] sm:$0xf]
  %v50 = vld [vmem:[%s2 + $0x8] sm:$0xf]
  %v51 = vld [vmem:[%s2 + $0xc] sm:$0xf]
  %v52 = vld [vmem:[%s2 + $0x10] sm:$0xf]
  %v53 = vld [vmem:[%s2 + $0x14] sm:$0xf]
  %v54 = vld [vmem:[%s2 + $0x18] sm:$0xf]
  %v55 = vld [vmem:[%s2 + $0x1c] sm:$0xf]
  %v56 = vld [vmem:[%s2 + $0x20] sm:$0xf]
  %v57 = vld [vmem:[%s2 + $0x24] sm:$0xf]
  %v58 = vld [vmem:[%s2 + $0x28] sm:$0xf]
  %v59 = vld [vmem:[%s2 + $0x2c] sm:$0xf]
  %v60 = vld [vmem:[%s2 + $0x30] sm:$0xf]
  %v61 = vld [vmem:[%s2 + $0x34] sm:$0xf]
  %v62 = vld [vmem:[%s2 + $0x38] sm:$0xf]
  %v63 = vld [vmem:[%s2 + $0x3c] sm:$0xf]
  %v64 = vperm.slane %v31, 0
  %v81 = vunpack.c.l.b16 %v32
  %v82 = vunpack.c.l.b16 %v33
  %v83 = vunpack.c.l.b16 %v34
  %v84 = vunpack.c.l.b16 %v35
  %v85 = vunpack.c.l.b16 %v36
  %v86 = vunpack.c.l.b16 %v37
  %v87 = vunpack.c.l.b16 %v38
  %v88 = vunpack.c.l.b16 %v39
  %v89 = vunpack.c.l.b16 %v40
  %v90 = vunpack.c.l.b16 %v41
  %v91 = vunpack.c.l.b16 %v42
  %v92 = vunpack.c.l.b16 %v43
  %v93 = vunpack.c.l.b16 %v44
  %v94 = vunpack.c.l.b16 %v45
  %v95 = vunpack.c.l.b16 %v46
  %v96 = vunpack.c.l.b16 %v47
  %v97 = vpack.c.b16 %v82, %v81
  %v98 = vpack.c.b16 %v84, %v83
  %v99 = vpack.c.b16 %v86, %v85
  %v100 = vpack.c.b16 %v88, %v87
  %v101 = vpack.c.b16 %v90, %v89
  %v102 = vpack.c.b16 %v92, %v91
  %v103 = vpack.c.b16 %v94, %v93
  %v104 = vpack.c.b16 %v96, %v95
  %v129 = vunpack.c.l.b16 %v48
  %v130 = vunpack.c.l.b16 %v49
  %v131 = vunpack.c.l.b16 %v50
  %v132 = vunpack.c.l.b16 %v51
  %v133 = vunpack.c.l.b16 %v52
  %v134 = vunpack.c.l.b16 %v53
  %v135 = vunpack.c.l.b16 %v54
  %v136 = vunpack.c.l.b16 %v55
  %v137 = vunpack.c.l.b16 %v56
  %v138 = vunpack.c.l.b16 %v57
  %v139 = vunpack.c.l.b16 %v58
  %v140 = vunpack.c.l.b16 %v59
  %v141 = vunpack.c.l.b16 %v60
  %v142 = vunpack.c.l.b16 %v61
  %v143 = vunpack.c.l.b16 %v62
  %v144 = vunpack.c.l.b16 %v63
  %v145 = vpack.c.b16 %v130, %v129
  %v146 = vpack.c.b16 %v132, %v131
  %v147 = vpack.c.b16 %v134, %v133
  %v148 = vpack.c.b16 %v136, %v135
  %v149 = vpack.c.b16 %v138, %v137
  %v150 = vpack.c.b16 %v140, %v139
  %v151 = vpack.c.b16 %v142, %v141
  %v152 = vpack.c.b16 %v144, %v143
  %161 = vmatpush.bf16.msra.mxu0 %v152
  %162 = vmatpush.bf16.msra.mxu0 %v151
  %163 = vmatpush.bf16.msra.mxu0 %v150
  %164 = vmatpush.bf16.msra.mxu0 %v149
  %165 = vmatpush.bf16.msra.mxu0 %v148
  %166 = vmatpush.bf16.msra.mxu0 %v147
  %167 = vmatpush.bf16.msra.mxu0 %v146
  %168 = vmatpush.bf16.msra.mxu0 %v145
  %169 = vmatmul.bf16.gmra.mxu0 %v97
  %v170 = vpop.f32.mrf.mxu0
  %v171 = vadd.f32 %v64, %v170
  %v172 = vpop.f32.mrf.mxu0
  %v173 = vadd.f32 %v64, %v172
  %174 = vmatmul.bf16.gmra.mxu0 %v98
  %v175 = vpop.f32.mrf.mxu0
  %v176 = vadd.f32 %v64, %v175
  %v177 = vpop.f32.mrf.mxu0
  %v178 = vadd.f32 %v64, %v177
  %179 = vmatmul.bf16.gmra.mxu0 %v99
  %v180 = vpop.f32.mrf.mxu0
  %v181 = vadd.f32 %v64, %v180
  %v182 = vpop.f32.mrf.mxu0
  %v183 = vadd.f32 %v64, %v182
  %184 = vmatmul.bf16.gmra.mxu0 %v100
  %v185 = vpop.f32.mrf.mxu0
  %v186 = vadd.f32 %v64, %v185
  %v187 = vpop.f32.mrf.mxu0
  %v188 = vadd.f32 %v64, %v187
  %189 = vmatmul.bf16.gmra.mxu0 %v101
  %v190 = vpop.f32.mrf.mxu0
  %v191 = vadd.f32 %v64, %v190
  %v192 = vpop.f32.mrf.mxu0
  %v193 = vadd.f32 %v64, %v192
  %194 = vmatmul.bf16.gmra.mxu0 %v102
  %v195 = vpop.f32.mrf.mxu0
  %v196 = vadd.f32 %v64, %v195
  %v197 = vpop.f32.mrf.mxu0
  %v198 = vadd.f32 %v64, %v197
  %199 = vmatmul.bf16.gmra.mxu0 %v103
  %v200 = vpop.f32.mrf.mxu0
  %v201 = vadd.f32 %v64, %v200
  %v202 = vpop.f32.mrf.mxu0
  %v203 = vadd.f32 %v64, %v202
  %204 = vmatmul.bf16.gmra.mxu0 %v104
  %v205 = vpop.f32.mrf.mxu0
  %v206 = vadd.f32 %v64, %v205
  %v207 = vpop.f32.mrf.mxu0
  %v208 = vadd.f32 %v64, %v207
  %209 = vdwg.mxu0
  %v210 = vmul.f32 %v171, 0.2
  %v211 = vmul.f32 %v173, 0.2
  %v212 = vmul.f32 %v176, 0.2
  %v213 = vmul.f32 %v178, 0.2
  %v214 = vmul.f32 %v181, 0.2
  %v215 = vmul.f32 %v183, 0.2
  %v216 = vmul.f32 %v186, 0.2
  %v217 = vmul.f32 %v188, 0.2
  %v218 = vmul.f32 %v191, 0.2
  %v219 = vmul.f32 %v193, 0.2
  %v220 = vmul.f32 %v196, 0.2
  %v221 = vmul.f32 %v198, 0.2
  %v222 = vmul.f32 %v201, 0.2
  %v223 = vmul.f32 %v203, 0.2
  %v224 = vmul.f32 %v206, 0.2
  %v225 = vmul.f32 %v208, 0.2
  %v226 = vmax.f32 %v171, %v210
  %v227 = vmax.f32 %v173, %v211
  %v228 = vmax.f32 %v176, %v212
  %v229 = vmax.f32 %v178, %v213
  %v230 = vmax.f32 %v181, %v214
  %v231 = vmax.f32 %v183, %v215
  %v232 = vmax.f32 %v186, %v216
  %v233 = vmax.f32 %v188, %v217
  %v234 = vmax.f32 %v191, %v218
  %v235 = vmax.f32 %v193, %v219
  %v236 = vmax.f32 %v196, %v220
  %v237 = vmax.f32 %v198, %v221
  %v238 = vmax.f32 %v201, %v222
  %v239 = vmax.f32 %v203, %v223
  %v240 = vmax.f32 %v206, %v224
  %v241 = vmax.f32 %v208, %v225
  %242 = vst [vmem:[%s8] sm:$0xff] %v226
  %243 = vst [vmem:[%s8 + $0x8] sm:$0xff] %v227
  %244 = vst [vmem:[%s8 + $0x10] sm:$0xff] %v228
  %245 = vst [vmem:[%s8 + $0x18] sm:$0xff] %v229
  %246 = vst [vmem:[%s8 + $0x20] sm:$0xff] %v230
  %247 = vst [vmem:[%s8 + $0x28] sm:$0xff] %v231
  %248 = vst [vmem:[%s8 + $0x30] sm:$0xff] %v232
  %249 = vst [vmem:[%s8 + $0x38] sm:$0xff] %v233
  %250 = vst [vmem:[%s8 + $0x40] sm:$0xff] %v234
  %251 = vst [vmem:[%s8 + $0x48] sm:$0xff] %v235
  %252 = vst [vmem:[%s8 + $0x50] sm:$0xff] %v236
  %253 = vst [vmem:[%s8 + $0x58] sm:$0xff] %v237
  %254 = vst [vmem:[%s8 + $0x60] sm:$0xff] %v238
  %255 = vst [vmem:[%s8 + $0x68] sm:$0xff] %v239
  %256 = vst [vmem:[%s8 + $0x70] sm:$0xff] %v240
  %257 = vst [vmem:[%s8 + $0x78] sm:$0xff] %v241
  %p258 = scmp.eq.s32.totalorder 0, 0
  // Predicated region
  $region34: #{gin_forward.5} parent=0 // pred_check
    %p259 = pneg %p258
  $region35: #{gin_forward.5} parent=0 // pred_check_branch
    %261 = sbr.rel (%p259) target = $region37
  $region36: #{gin_forward.5} parent=0 // pred_region
    %262 = vst [vmem:[#allocation2] sm:$0xff] 0.0
  $region37: #{gin_forward.5} parent=0 // pred_fallthru
    _
  %v263 = vld [vmem:[#allocation2] sm:$0xff]
  %v264 = vld [vmem:[%s1] sm:$0xf]
  %v265 = vpack.c.bf16 %v227, %v226
  %v266 = vpack.c.bf16 %v229, %v228
  %v267 = vpack.c.bf16 %v231, %v230
  %v268 = vpack.c.bf16 %v233, %v232
  %v269 = vpack.c.bf16 %v235, %v234
  %v270 = vpack.c.bf16 %v237, %v236
  %v271 = vpack.c.bf16 %v239, %v238
  %v272 = vpack.c.bf16 %v241, %v240
  %273 = vmatpush.bf16.msra.mxu0 %v272
  %274 = vmatpush.bf16.msra.mxu0 %v271
  %275 = vmatpush.bf16.msra.mxu0 %v270
  %276 = vmatpush.bf16.msra.mxu0 %v269
  %277 = vmatpush.bf16.msra.mxu0 %v268
  %278 = vmatpush.bf16.msra.mxu0 %v267
  %279 = vmatpush.bf16.msra.mxu0 %v266
  %280 = vmatpush.bf16.msra.mxu0 %v265
  %281 = vmatmul.bf16.gmra.mxu0 %v264
  %v282 = vpop.f32.mrf.mxu0
  %v283 = vadd.f32 0.0, %v282
  %v284 = vpop.f32.mrf.mxu0
  %285 = vdwg.mxu0
  %v286 = vadd.f32 %v263, %v283
  %287 = vst [vmem:[#allocation2] sm:$0xff] %v286
  // Predicated region
  $region38: #{gin_forward.5} parent=0 // pred_check
    %p288 = pneg %p258
  $region39: #{gin_forward.5} parent=0 // pred_check_branch
    %290 = sbr.rel (%p288) target = $region41
  $region40: #{gin_forward.5} parent=0 // pred_region
    %v291 = vld [vmem:[#allocation2] sm:$0xff]
    %v292 = vld [vmem:[%s7] sm:$0xff]
    %294 = vset.pattern.permute.xlu0 0
    %295 = vperm.xlu0 %294, %v292
    %v296 = vpop.permute.xlu0 %295
    %v298 = vmul.f32 %v291, %v296
    %v299 = vpack.c.bf16 %v298, %v298
    %v300 = vld [vmem:[%s3] sm:$0xf]
    %v301 = vld [vmem:[%s3 + $0x4] sm:$0xf]
    %v302 = vld [vmem:[%s3 + $0x8] sm:$0xf]
    %v303 = vld [vmem:[%s3 + $0xc] sm:$0xf]
    %v304 = vld [vmem:[%s3 + $0x10] sm:$0xf]
    %v305 = vld [vmem:[%s3 + $0x14] sm:$0xf]
    %v306 = vld [vmem:[%s3 + $0x18] sm:$0xf]
    %v307 = vld [vmem:[%s3 + $0x1c] sm:$0xf]
    %v308 = vld [vmem:[%s3 + $0x20] sm:$0xf]
    %v309 = vld [vmem:[%s3 + $0x24] sm:$0xf]
    %v310 = vld [vmem:[%s3 + $0x28] sm:$0xf]
    %v311 = vld [vmem:[%s3 + $0x2c] sm:$0xf]
    %v312 = vld [vmem:[%s3 + $0x30] sm:$0xf]
    %v313 = vld [vmem:[%s3 + $0x34] sm:$0xf]
    %v314 = vld [vmem:[%s3 + $0x38] sm:$0xf]
    %v315 = vld [vmem:[%s3 + $0x3c] sm:$0xf]
    %v316 = vperm.slane %v31, 1
    %v333 = vunpack.c.l.b16 %v300
    %v334 = vunpack.c.l.b16 %v301
    %v335 = vunpack.c.l.b16 %v302
    %v336 = vunpack.c.l.b16 %v303
    %v337 = vunpack.c.l.b16 %v304
    %v338 = vunpack.c.l.b16 %v305
    %v339 = vunpack.c.l.b16 %v306
    %v340 = vunpack.c.l.b16 %v307
    %v341 = vunpack.c.l.b16 %v308
    %v342 = vunpack.c.l.b16 %v309
    %v343 = vunpack.c.l.b16 %v310
    %v344 = vunpack.c.l.b16 %v311
    %v345 = vunpack.c.l.b16 %v312
    %v346 = vunpack.c.l.b16 %v313
    %v347 = vunpack.c.l.b16 %v314
    %v348 = vunpack.c.l.b16 %v315
    %v349 = vpack.c.b16 %v334, %v333
    %v350 = vpack.c.b16 %v336, %v335
    %v351 = vpack.c.b16 %v338, %v337
    %v352 = vpack.c.b16 %v340, %v339
    %v353 = vpack.c.b16 %v342, %v341
    %v354 = vpack.c.b16 %v344, %v343
    %v355 = vpack.c.b16 %v346, %v345
    %v356 = vpack.c.b16 %v348, %v347
    %365 = vmatpush.bf16.msra.mxu0 %v356
    %366 = vmatpush.bf16.msra.mxu0 %v355
    %367 = vmatpush.bf16.msra.mxu0 %v354
    %368 = vmatpush.bf16.msra.mxu0 %v353
    %369 = vmatpush.bf16.msra.mxu0 %v352
    %370 = vmatpush.bf16.msra.mxu0 %v351
    %371 = vmatpush.bf16.msra.mxu0 %v350
    %372 = vmatpush.bf16.msra.mxu0 %v349
    %373 = vmatmul.bf16.gmra.mxu0 %v299
    %v374 = vpop.f32.mrf.mxu0
    %v375 = vadd.f32 %v316, %v374
    %v376 = vpop.f32.mrf.mxu0
    %377 = vdwg.mxu0
    %v378 = vmax.f32 %v375, 0.0
    %v379 = vperm.slane %v31, 2
    %v380 = vmul.f32 %v378, %v379
    %v381 = vperm.slane %v31, 3
    %v382 = vadd.f32 %v380, %v381
    %v383 = vpack.c.bf16 %v382, %v382
    %v384 = vld [vmem:[%s4] sm:$0xf]
    %v385 = vld [vmem:[%s4 + $0x4] sm:$0xf]
    %v386 = vld [vmem:[%s4 + $0x8] sm:$0xf]
    %v387 = vld [vmem:[%s4 + $0xc] sm:$0xf]
    %v388 = vld [vmem:[%s4 + $0x10] sm:$0xf]
    %v389 = vld [vmem:[%s4 + $0x14] sm:$0xf]
    %v390 = vld [vmem:[%s4 + $0x18] sm:$0xf]
    %v391 = vld [vmem:[%s4 + $0x1c] sm:$0xf]
    %v392 = vld [vmem:[%s4 + $0x20] sm:$0xf]
    %v393 = vld [vmem:[%s4 + $0x24] sm:$0xf]
    %v394 = vld [vmem:[%s4 + $0x28] sm:$0xf]
    %v395 = vld [vmem:[%s4 + $0x2c] sm:$0xf]
    %v396 = vld [vmem:[%s4 + $0x30] sm:$0xf]
    %v397 = vld [vmem:[%s4 + $0x34] sm:$0xf]
    %v398 = vld [vmem:[%s4 + $0x38] sm:$0xf]
    %v399 = vld [vmem:[%s4 + $0x3c] sm:$0xf]
    %v400 = vld [vmem:[%s6] sm:$0x1]
    %v402 = vperm.slane %v400, 0
    %v420 = vunpack.c.l.b16 %v384
    %v421 = vunpack.c.l.b16 %v385
    %v422 = vunpack.c.l.b16 %v386
    %v423 = vunpack.c.l.b16 %v387
    %v424 = vunpack.c.l.b16 %v388
    %v425 = vunpack.c.l.b16 %v389
    %v426 = vunpack.c.l.b16 %v390
    %v427 = vunpack.c.l.b16 %v391
    %v428 = vunpack.c.l.b16 %v392
    %v429 = vunpack.c.l.b16 %v393
    %v430 = vunpack.c.l.b16 %v394
    %v431 = vunpack.c.l.b16 %v395
    %v432 = vunpack.c.l.b16 %v396
    %v433 = vunpack.c.l.b16 %v397
    %v434 = vunpack.c.l.b16 %v398
    %v435 = vunpack.c.l.b16 %v399
    %v436 = vpack.c.b16 %v421, %v420
    %v437 = vpack.c.b16 %v423, %v422
    %v438 = vpack.c.b16 %v425, %v424
    %v439 = vpack.c.b16 %v427, %v426
    %v440 = vpack.c.b16 %v429, %v428
    %v441 = vpack.c.b16 %v431, %v430
    %v442 = vpack.c.b16 %v433, %v432
    %v443 = vpack.c.b16 %v435, %v434
    %452 = vmatpush.bf16.msra.mxu0 %v443
    %453 = vmatpush.bf16.msra.mxu0 %v442
    %454 = vmatpush.bf16.msra.mxu0 %v441
    %455 = vmatpush.bf16.msra.mxu0 %v440
    %456 = vmatpush.bf16.msra.mxu0 %v439
    %457 = vmatpush.bf16.msra.mxu0 %v438
    %458 = vmatpush.bf16.msra.mxu0 %v437
    %459 = vmatpush.bf16.msra.mxu0 %v436
    %460 = vmatmul.bf16.gmra.mxu0 %v383
    %v461 = vpop.f32.mrf.mxu0
    %v462 = vadd.f32 %v402, %v461
    %v463 = vpop.f32.mrf.mxu0
    %464 = vdwg.mxu0
    %465 = vst [vmem:[%s9] sm:$0xff] %v462
  $region41: #{gin_forward.5} parent=0 // pred_fallthru
    _
  // Predicated region
  $region42: #{gin_forward.5} parent=0 // pred_check
    _
  $region43: #{gin_forward.5} parent=0 // pred_check_branch
    %467 = sbr.rel (0) target = $region45
  $region44: #{gin_forward.5} parent=0 // pred_region
    _
  $region45: #{gin_forward.5} parent=0 // pred_fallthru
    _
  // Predicated region
  $region46: #{gin_forward.5} parent=0 // pred_check
    _
  $region47: #{gin_forward.5} parent=0 // pred_check_branch
    %469 = sbr.rel (0) target = $region49
  $region48: #{gin_forward.5} parent=0 // pred_region
    _
  $region49: #{gin_forward.5} parent=0 // pred_fallthru
    _
  // Predicated region
  $region50: #{gin_forward.5} parent=0 // pred_check
    _
  $region51: #{gin_forward.5} parent=0 // pred_check_branch
    %471 = sbr.rel (0) target = $region53
  $region52: #{gin_forward.5} parent=0 // pred_region
    _
  $region53: #{gin_forward.5} parent=0 // pred_fallthru
    _
  // Predicated region
  $region54: #{gin_forward.5} parent=0 // pred_check
    _
  $region55: #{gin_forward.5} parent=0 // pred_check_branch
    %473 = sbr.rel (0) target = $region57
  $region56: #{gin_forward.5} parent=0 // pred_region
    _
  $region57: #{gin_forward.5} parent=0 // pred_fallthru
    _

// kernel: gin_forward.3
$region0: #{gin_forward.3}
  #allocation0 [shape = 'u32[]', space=smem, size = 0x4, offset = 0x4, fixed_abs, tag = 'smem constant byte address 0x4 - core index']
  #allocation1 [shape = 'u32[72,128]{1,0:T(1,128)}', space=vmem, size = 0x9000, scoped, tag = 'internal scratch']
  #allocation2 [shape = 'f32[128,128]{1,0:T(8,128)}', space=vmem, size = 0x10000, scoped, tag = 'scratch operand']
  #allocation3 [shape = 'f32[1]{0:T(128)S(6)}', space=smem, size = 0x200, scoped, tag = 'scoped memory for gin_forward.3']
  %s0 = inlined_call_operand.vmem [shape: bf16[128,128], index: 0, kind: input, shape index: {}]
  %s1 = inlined_call_operand.vmem [shape: bf16[128,128], index: 1, kind: input, shape index: {}, may-alias: {1,2}]
  %s2 = inlined_call_operand.vmem [shape: bf16[128,128], index: 2, kind: input, shape index: {}, may-alias: {1,2}]
  %s3 = inlined_call_operand.vmem [shape: bf16[128,128], index: 3, kind: input, shape index: {}]
  %s4 = inlined_call_operand.vmem [shape: f32[3,128], index: 4, kind: input, shape index: {}]
  %s5 = inlined_call_operand.<no memory space> [shape: f32[1], index: 5, kind: input, shape index: {}]
  %s6 = inlined_call_operand.vmem [shape: bf16[128,128], index: 6, kind: output, shape index: {}]
  %s7 = sld [smem:[#allocation0]]
  $region42: #{gin_forward.3} parent=0
    _
  %s9 = ssub.s32 1, %s7
  %s10 = scalar_select 0, %s9, %s7
  %11 = sst [smem:[#allocation3]] %s5
  // Predicated region
  $region2: #{gin_forward.3} parent=0 // pred_check
    _
  $region3: #{gin_forward.3} parent=0 // pred_check_branch
    %13 = sbr.rel (0) target = $region5
  $region4: #{gin_forward.3} parent=0 // pred_region
    _
  $region5: #{gin_forward.3} parent=0 // pred_fallthru
    _
  // Predicated region
  $region6: #{gin_forward.3} parent=0 // pred_check
    _
  $region7: #{gin_forward.3} parent=0 // pred_check_branch
    %15 = sbr.rel (0) target = $region9
  $region8: #{gin_forward.3} parent=0 // pred_region
    _
  $region9: #{gin_forward.3} parent=0 // pred_fallthru
    _
  // Predicated region
  $region10: #{gin_forward.3} parent=0 // pred_check
    _
  $region11: #{gin_forward.3} parent=0 // pred_check_branch
    %17 = sbr.rel (0) target = $region13
  $region12: #{gin_forward.3} parent=0 // pred_region
    _
  $region13: #{gin_forward.3} parent=0 // pred_fallthru
    _
  // Predicated region
  $region14: #{gin_forward.3} parent=0 // pred_check
    _
  $region15: #{gin_forward.3} parent=0 // pred_check_branch
    %19 = sbr.rel (0) target = $region17
  $region16: #{gin_forward.3} parent=0 // pred_region
    _
  $region17: #{gin_forward.3} parent=0 // pred_fallthru
    _
  // Predicated region
  $region18: #{gin_forward.3} parent=0 // pred_check
    _
  $region19: #{gin_forward.3} parent=0 // pred_check_branch
    %21 = sbr.rel (0) target = $region21
  $region20: #{gin_forward.3} parent=0 // pred_region
    _
  $region21: #{gin_forward.3} parent=0 // pred_fallthru
    _
  // Predicated region
  $region22: #{gin_forward.3} parent=0 // pred_check
    _
  $region23: #{gin_forward.3} parent=0 // pred_check_branch
    %23 = sbr.rel (0) target = $region25
  $region24: #{gin_forward.3} parent=0 // pred_region
    _
  $region25: #{gin_forward.3} parent=0 // pred_fallthru
    _
  %p24 = scmp.eq.s32.totalorder 0, 0
  // Predicated region
  $region26: #{gin_forward.3} parent=0 // pred_check
    %p25 = pneg %p24
  $region27: #{gin_forward.3} parent=0 // pred_check_branch
    %27 = sbr.rel (%p25) target = $region29
  $region28: #{gin_forward.3} parent=0 // pred_region
    %s28 = sld [smem:[#allocation3]]
    %v29 = vld [vmem:[%s2] sm:$0xf]
    %v30 = vld [vmem:[%s2 + $0x4] sm:$0xf]
    %v31 = vld [vmem:[%s2 + $0x8] sm:$0xf]
    %v32 = vld [vmem:[%s2 + $0xc] sm:$0xf]
    %v33 = vld [vmem:[%s2 + $0x10] sm:$0xf]
    %v34 = vld [vmem:[%s2 + $0x14] sm:$0xf]
    %v35 = vld [vmem:[%s2 + $0x18] sm:$0xf]
    %v36 = vld [vmem:[%s2 + $0x1c] sm:$0xf]
    %v37 = vld [vmem:[%s2 + $0x20] sm:$0xf]
    %v38 = vld [vmem:[%s2 + $0x24] sm:$0xf]
    %v39 = vld [vmem:[%s2 + $0x28] sm:$0xf]
    %v40 = vld [vmem:[%s2 + $0x2c] sm:$0xf]
    %v41 = vld [vmem:[%s2 + $0x30] sm:$0xf]
    %v42 = vld [vmem:[%s2 + $0x34] sm:$0xf]
    %v43 = vld [vmem:[%s2 + $0x38] sm:$0xf]
    %v44 = vld [vmem:[%s2 + $0x3c] sm:$0xf]
    %v45 = vunpack.c.l.bf16 %v29
    %v46 = vunpack.c.l.bf16 %v30
    %v47 = vunpack.c.l.bf16 %v31
    %v48 = vunpack.c.l.bf16 %v32
    %v49 = vunpack.c.l.bf16 %v33
    %v50 = vunpack.c.l.bf16 %v34
    %v51 = vunpack.c.l.bf16 %v35
    %v52 = vunpack.c.l.bf16 %v36
    %v53 = vunpack.c.l.bf16 %v37
    %v54 = vunpack.c.l.bf16 %v38
    %v55 = vunpack.c.l.bf16 %v39
    %v56 = vunpack.c.l.bf16 %v40
    %v57 = vunpack.c.l.bf16 %v41
    %v58 = vunpack.c.l.bf16 %v42
    %v59 = vunpack.c.l.bf16 %v43
    %v60 = vunpack.c.l.bf16 %v44
    %v61 = vstv %s28
    %v62 = vmul.f32 %v61, %v45
    %v63 = vmul.f32 %v61, %v46
    %v64 = vmul.f32 %v61, %v47
    %v65 = vmul.f32 %v61, %v48
    %v66 = vmul.f32 %v61, %v49
    %v67 = vmul.f32 %v61, %v50
    %v68 = vmul.f32 %v61, %v51
    %v69 = vmul.f32 %v61, %v52
    %v70 = vmul.f32 %v61, %v53
    %v71 = vmul.f32 %v61, %v54
    %v72 = vmul.f32 %v61, %v55
    %v73 = vmul.f32 %v61, %v56
    %v74 = vmul.f32 %v61, %v57
    %v75 = vmul.f32 %v61, %v58
    %v76 = vmul.f32 %v61, %v59
    %v77 = vmul.f32 %v61, %v60
    %78 = vst [vmem:[#allocation2] sm:$0xff] %v62
    %79 = vst [vmem:[#allocation2 + $0x8] sm:$0xff] %v63
    %80 = vst [vmem:[#allocation2 + $0x10] sm:$0xff] %v64
    %81 = vst [vmem:[#allocation2 + $0x18] sm:$0xff] %v65
    %82 = vst [vmem:[#allocation2 + $0x20] sm:$0xff] %v66
    %83 = vst [vmem:[#allocation2 + $0x28] sm:$0xff] %v67
    %84 = vst [vmem:[#allocation2 + $0x30] sm:$0xff] %v68
    %85 = vst [vmem:[#allocation2 + $0x38] sm:$0xff] %v69
    %86 = vst [vmem:[#allocation2 + $0x40] sm:$0xff] %v70
    %87 = vst [vmem:[#allocation2 + $0x48] sm:$0xff] %v71
    %88 = vst [vmem:[#allocation2 + $0x50] sm:$0xff] %v72
    %89 = vst [vmem:[#allocation2 + $0x58] sm:$0xff] %v73
    %90 = vst [vmem:[#allocation2 + $0x60] sm:$0xff] %v74
    %91 = vst [vmem:[#allocation2 + $0x68] sm:$0xff] %v75
    %92 = vst [vmem:[#allocation2 + $0x70] sm:$0xff] %v76
    %93 = vst [vmem:[#allocation2 + $0x78] sm:$0xff] %v77
  $region29: #{gin_forward.3} parent=0 // pred_fallthru
    _
  %v94 = vld [vmem:[#allocation2] sm:$0xff]
  %v95 = vld [vmem:[#allocation2 + $0x8] sm:$0xff]
  %v96 = vld [vmem:[#allocation2 + $0x10] sm:$0xff]
  %v97 = vld [vmem:[#allocation2 + $0x18] sm:$0xff]
  %v98 = vld [vmem:[#allocation2 + $0x20] sm:$0xff]
  %v99 = vld [vmem:[#allocation2 + $0x28] sm:$0xff]
  %v100 = vld [vmem:[#allocation2 + $0x30] sm:$0xff]
  %v101 = vld [vmem:[#allocation2 + $0x38] sm:$0xff]
  %v102 = vld [vmem:[#allocation2 + $0x40] sm:$0xff]
  %v103 = vld [vmem:[#allocation2 + $0x48] sm:$0xff]
  %v104 = vld [vmem:[#allocation2 + $0x50] sm:$0xff]
  %v105 = vld [vmem:[#allocation2 + $0x58] sm:$0xff]
  %v106 = vld [vmem:[#allocation2 + $0x60] sm:$0xff]
  %v107 = vld [vmem:[#allocation2 + $0x68] sm:$0xff]
  %v108 = vld [vmem:[#allocation2 + $0x70] sm:$0xff]
  %v109 = vld [vmem:[#allocation2 + $0x78] sm:$0xff]
  %v110 = vld [vmem:[%s0] sm:$0xf]
  %v111 = vld [vmem:[%s0 + $0x4] sm:$0xf]
  %v112 = vld [vmem:[%s0 + $0x8] sm:$0xf]
  %v113 = vld [vmem:[%s0 + $0xc] sm:$0xf]
  %v114 = vld [vmem:[%s0 + $0x10] sm:$0xf]
  %v115 = vld [vmem:[%s0 + $0x14] sm:$0xf]
  %v116 = vld [vmem:[%s0 + $0x18] sm:$0xf]
  %v117 = vld [vmem:[%s0 + $0x1c] sm:$0xf]
  %v118 = vld [vmem:[%s0 + $0x20] sm:$0xf]
  %v119 = vld [vmem:[%s0 + $0x24] sm:$0xf]
  %v120 = vld [vmem:[%s0 + $0x28] sm:$0xf]
  %v121 = vld [vmem:[%s0 + $0x2c] sm:$0xf]
  %v122 = vld [vmem:[%s0 + $0x30] sm:$0xf]
  %v123 = vld [vmem:[%s0 + $0x34] sm:$0xf]
  %v124 = vld [vmem:[%s0 + $0x38] sm:$0xf]
  %v125 = vld [vmem:[%s0 + $0x3c] sm:$0xf]
  %v126 = vld [vmem:[%s1] sm:$0xf]
  %v127 = vld [vmem:[%s1 + $0x4] sm:$0xf]
  %v128 = vld [vmem:[%s1 + $0x8] sm:$0xf]
  %v129 = vld [vmem:[%s1 + $0xc] sm:$0xf]
  %v130 = vld [vmem:[%s1 + $0x10] sm:$0xf]
  %v131 = vld [vmem:[%s1 + $0x14] sm:$0xf]
  %v132 = vld [vmem:[%s1 + $0x18] sm:$0xf]
  %v133 = vld [vmem:[%s1 + $0x1c] sm:$0xf]
  %v134 = vld [vmem:[%s1 + $0x20] sm:$0xf]
  %v135 = vld [vmem:[%s1 + $0x24] sm:$0xf]
  %v136 = vld [vmem:[%s1 + $0x28] sm:$0xf]
  %v137 = vld [vmem:[%s1 + $0x2c] sm:$0xf]
  %v138 = vld [vmem:[%s1 + $0x30] sm:$0xf]
  %v139 = vld [vmem:[%s1 + $0x34] sm:$0xf]
  %v140 = vld [vmem:[%s1 + $0x38] sm:$0xf]
  %v141 = vld [vmem:[%s1 + $0x3c] sm:$0xf]
  %v158 = vunpack.c.l.b16 %v110
  %v159 = vunpack.c.l.b16 %v111
  %v160 = vunpack.c.l.b16 %v112
  %v161 = vunpack.c.l.b16 %v113
  %v162 = vunpack.c.l.b16 %v114
  %v163 = vunpack.c.l.b16 %v115
  %v164 = vunpack.c.l.b16 %v116
  %v165 = vunpack.c.l.b16 %v117
  %v166 = vunpack.c.l.b16 %v118
  %v167 = vunpack.c.l.b16 %v119
  %v168 = vunpack.c.l.b16 %v120
  %v169 = vunpack.c.l.b16 %v121
  %v170 = vunpack.c.l.b16 %v122
  %v171 = vunpack.c.l.b16 %v123
  %v172 = vunpack.c.l.b16 %v124
  %v173 = vunpack.c.l.b16 %v125
  %v174 = vpack.c.b16 %v159, %v158
  %v175 = vpack.c.b16 %v161, %v160
  %v176 = vpack.c.b16 %v163, %v162
  %v177 = vpack.c.b16 %v165, %v164
  %v178 = vpack.c.b16 %v167, %v166
  %v179 = vpack.c.b16 %v169, %v168
  %v180 = vpack.c.b16 %v171, %v170
  %v181 = vpack.c.b16 %v173, %v172
  %v206 = vunpack.c.l.b16 %v126
  %v207 = vunpack.c.l.b16 %v127
  %v208 = vunpack.c.l.b16 %v128
  %v209 = vunpack.c.l.b16 %v129
  %v210 = vunpack.c.l.b16 %v130
  %v211 = vunpack.c.l.b16 %v131
  %v212 = vunpack.c.l.b16 %v132
  %v213 = vunpack.c.l.b16 %v133
  %v214 = vunpack.c.l.b16 %v134
  %v215 = vunpack.c.l.b16 %v135
  %v216 = vunpack.c.l.b16 %v136
  %v217 = vunpack.c.l.b16 %v137
  %v218 = vunpack.c.l.b16 %v138
  %v219 = vunpack.c.l.b16 %v139
  %v220 = vunpack.c.l.b16 %v140
  %v221 = vunpack.c.l.b16 %v141
  %v222 = vpack.c.b16 %v207, %v206
  %v223 = vpack.c.b16 %v209, %v208
  %v224 = vpack.c.b16 %v211, %v210
  %v225 = vpack.c.b16 %v213, %v212
  %v226 = vpack.c.b16 %v215, %v214
  %v227 = vpack.c.b16 %v217, %v216
  %v228 = vpack.c.b16 %v219, %v218
  %v229 = vpack.c.b16 %v221, %v220
  %238 = vmatpush.bf16.msra.mxu0 %v229
  %239 = vmatpush.bf16.msra.mxu0 %v228
  %240 = vmatpush.bf16.msra.mxu0 %v227
  %241 = vmatpush.bf16.msra.mxu0 %v226
  %242 = vmatpush.bf16.msra.mxu0 %v225
  %243 = vmatpush.bf16.msra.mxu0 %v224
  %244 = vmatpush.bf16.msra.mxu0 %v223
  %245 = vmatpush.bf16.msra.mxu0 %v222
  %246 = vmatmul.bf16.gmra.mxu0 %v174
  %v247 = vpop.f32.mrf.mxu0
  %v248 = vadd.f32 0.0, %v247
  %v249 = vpop.f32.mrf.mxu0
  %v250 = vadd.f32 0.0, %v249
  %251 = vmatmul.bf16.gmra.mxu0 %v175
  %v252 = vpop.f32.mrf.mxu0
  %v253 = vadd.f32 0.0, %v252
  %v254 = vpop.f32.mrf.mxu0
  %v255 = vadd.f32 0.0, %v254
  %256 = vmatmul.bf16.gmra.mxu0 %v176
  %v257 = vpop.f32.mrf.mxu0
  %v258 = vadd.f32 0.0, %v257
  %v259 = vpop.f32.mrf.mxu0
  %v260 = vadd.f32 0.0, %v259
  %261 = vmatmul.bf16.gmra.mxu0 %v177
  %v262 = vpop.f32.mrf.mxu0
  %v263 = vadd.f32 0.0, %v262
  %v264 = vpop.f32.mrf.mxu0
  %v265 = vadd.f32 0.0, %v264
  %266 = vmatmul.bf16.gmra.mxu0 %v178
  %v267 = vpop.f32.mrf.mxu0
  %v268 = vadd.f32 0.0, %v267
  %v269 = vpop.f32.mrf.mxu0
  %v270 = vadd.f32 0.0, %v269
  %271 = vmatmul.bf16.gmra.mxu0 %v179
  %v272 = vpop.f32.mrf.mxu0
  %v273 = vadd.f32 0.0, %v272
  %v274 = vpop.f32.mrf.mxu0
  %v275 = vadd.f32 0.0, %v274
  %276 = vmatmul.bf16.gmra.mxu0 %v180
  %v277 = vpop.f32.mrf.mxu0
  %v278 = vadd.f32 0.0, %v277
  %v279 = vpop.f32.mrf.mxu0
  %v280 = vadd.f32 0.0, %v279
  %281 = vmatmul.bf16.gmra.mxu0 %v181
  %v282 = vpop.f32.mrf.mxu0
  %v283 = vadd.f32 0.0, %v282
  %v284 = vpop.f32.mrf.mxu0
  %v285 = vadd.f32 0.0, %v284
  %286 = vdwg.mxu0
  %v287 = vadd.f32 %v94, %v248
  %v288 = vadd.f32 %v95, %v250
  %v289 = vadd.f32 %v96, %v253
  %v290 = vadd.f32 %v97, %v255
  %v291 = vadd.f32 %v98, %v258
  %v292 = vadd.f32 %v99, %v260
  %v293 = vadd.f32 %v100, %v263
  %v294 = vadd.f32 %v101, %v265
  %v295 = vadd.f32 %v102, %v268
  %v296 = vadd.f32 %v103, %v270
  %v297 = vadd.f32 %v104, %v273
  %v298 = vadd.f32 %v105, %v275
  %v299 = vadd.f32 %v106, %v278
  %v300 = vadd.f32 %v107, %v280
  %v301 = vadd.f32 %v108, %v283
  %v302 = vadd.f32 %v109, %v285
  %303 = vst [vmem:[#allocation2] sm:$0xff] %v287
  %304 = vst [vmem:[#allocation2 + $0x8] sm:$0xff] %v288
  %305 = vst [vmem:[#allocation2 + $0x10] sm:$0xff] %v289
  %306 = vst [vmem:[#allocation2 + $0x18] sm:$0xff] %v290
  %307 = vst [vmem:[#allocation2 + $0x20] sm:$0xff] %v291
  %308 = vst [vmem:[#allocation2 + $0x28] sm:$0xff] %v292
  %309 = vst [vmem:[#allocation2 + $0x30] sm:$0xff] %v293
  %310 = vst [vmem:[#allocation2 + $0x38] sm:$0xff] %v294
  %311 = vst [vmem:[#allocation2 + $0x40] sm:$0xff] %v295
  %312 = vst [vmem:[#allocation2 + $0x48] sm:$0xff] %v296
  %313 = vst [vmem:[#allocation2 + $0x50] sm:$0xff] %v297
  %314 = vst [vmem:[#allocation2 + $0x58] sm:$0xff] %v298
  %315 = vst [vmem:[#allocation2 + $0x60] sm:$0xff] %v299
  %316 = vst [vmem:[#allocation2 + $0x68] sm:$0xff] %v300
  %317 = vst [vmem:[#allocation2 + $0x70] sm:$0xff] %v301
  %318 = vst [vmem:[#allocation2 + $0x78] sm:$0xff] %v302
  // Predicated region
  $region30: #{gin_forward.3} parent=0 // pred_check
    %p319 = pneg %p24
  $region31: #{gin_forward.3} parent=0 // pred_check_branch
    %321 = sbr.rel (%p319) target = $region33
  $region32: #{gin_forward.3} parent=0 // pred_region
    %v322 = vld [vmem:[%s4] sm:$0x7]
    %v323 = vld [vmem:[#allocation2] sm:$0xff]
    %v324 = vld [vmem:[#allocation2 + $0x8] sm:$0xff]
    %v325 = vld [vmem:[#allocation2 + $0x10] sm:$0xff]
    %v326 = vld [vmem:[#allocation2 + $0x18] sm:$0xff]
    %v327 = vld [vmem:[#allocation2 + $0x20] sm:$0xff]
    %v328 = vld [vmem:[#allocation2 + $0x28] sm:$0xff]
    %v329 = vld [vmem:[#allocation2 + $0x30] sm:$0xff]
    %v330 = vld [vmem:[#allocation2 + $0x38] sm:$0xff]
    %v331 = vld [vmem:[#allocation2 + $0x40] sm:$0xff]
    %v332 = vld [vmem:[#allocation2 + $0x48] sm:$0xff]
    %v333 = vld [vmem:[#allocation2 + $0x50] sm:$0xff]
    %v334 = vld [vmem:[#allocation2 + $0x58] sm:$0xff]
    %v335 = vld [vmem:[#allocation2 + $0x60] sm:$0xff]
    %v336 = vld [vmem:[#allocation2 + $0x68] sm:$0xff]
    %v337 = vld [vmem:[#allocation2 + $0x70] sm:$0xff]
    %v338 = vld [vmem:[#allocation2 + $0x78] sm:$0xff]
    %v339 = vpack.c.bf16 %v324, %v323
    %v340 = vpack.c.bf16 %v326, %v325
    %v341 = vpack.c.bf16 %v328, %v327
    %v342 = vpack.c.bf16 %v330, %v329
    %v343 = vpack.c.bf16 %v332, %v331
    %v344 = vpack.c.bf16 %v334, %v333
    %v345 = vpack.c.bf16 %v336, %v335
    %v346 = vpack.c.bf16 %v338, %v337
    %v347 = vld [vmem:[%s3] sm:$0xf]
    %v348 = vld [vmem:[%s3 + $0x4] sm:$0xf]
    %v349 = vld [vmem:[%s3 + $0x8] sm:$0xf]
    %v350 = vld [vmem:[%s3 + $0xc] sm:$0xf]
    %v351 = vld [vmem:[%s3 + $0x10] sm:$0xf]
    %v352 = vld [vmem:[%s3 + $0x14] sm:$0xf]
    %v353 = vld [vmem:[%s3 + $0x18] sm:$0xf]
    %v354 = vld [vmem:[%s3 + $0x1c] sm:$0xf]
    %v355 = vld [vmem:[%s3 + $0x20] sm:$0xf]
    %v356 = vld [vmem:[%s3 + $0x24] sm:$0xf]
    %v357 = vld [vmem:[%s3 + $0x28] sm:$0xf]
    %v358 = vld [vmem:[%s3 + $0x2c] sm:$0xf]
    %v359 = vld [vmem:[%s3 + $0x30] sm:$0xf]
    %v360 = vld [vmem:[%s3 + $0x34] sm:$0xf]
    %v361 = vld [vmem:[%s3 + $0x38] sm:$0xf]
    %v362 = vld [vmem:[%s3 + $0x3c] sm:$0xf]
    %v363 = vperm.slane %v322, 0
    %v380 = vunpack.c.l.b16 %v347
    %v381 = vunpack.c.l.b16 %v348
    %v382 = vunpack.c.l.b16 %v349
    %v383 = vunpack.c.l.b16 %v350
    %v384 = vunpack.c.l.b16 %v351
    %v385 = vunpack.c.l.b16 %v352
    %v386 = vunpack.c.l.b16 %v353
    %v387 = vunpack.c.l.b16 %v354
    %v388 = vunpack.c.l.b16 %v355
    %v389 = vunpack.c.l.b16 %v356
    %v390 = vunpack.c.l.b16 %v357
    %v391 = vunpack.c.l.b16 %v358
    %v392 = vunpack.c.l.b16 %v359
    %v393 = vunpack.c.l.b16 %v360
    %v394 = vunpack.c.l.b16 %v361
    %v395 = vunpack.c.l.b16 %v362
    %v396 = vpack.c.b16 %v381, %v380
    %v397 = vpack.c.b16 %v383, %v382
    %v398 = vpack.c.b16 %v385, %v384
    %v399 = vpack.c.b16 %v387, %v386
    %v400 = vpack.c.b16 %v389, %v388
    %v401 = vpack.c.b16 %v391, %v390
    %v402 = vpack.c.b16 %v393, %v392
    %v403 = vpack.c.b16 %v395, %v394
    %412 = vmatpush.bf16.msra.mxu0 %v403
    %413 = vmatpush.bf16.msra.mxu0 %v402
    %414 = vmatpush.bf16.msra.mxu0 %v401
    %415 = vmatpush.bf16.msra.mxu0 %v400
    %416 = vmatpush.bf16.msra.mxu0 %v399
    %417 = vmatpush.bf16.msra.mxu0 %v398
    %418 = vmatpush.bf16.msra.mxu0 %v397
    %419 = vmatpush.bf16.msra.mxu0 %v396
    %420 = vmatmul.bf16.gmra.mxu0 %v339
    %v421 = vpop.f32.mrf.mxu0
    %v422 = vadd.f32 %v363, %v421
    %v423 = vpop.f32.mrf.mxu0
    %v424 = vadd.f32 %v363, %v423
    %425 = vmatmul.bf16.gmra.mxu0 %v340
    %v426 = vpop.f32.mrf.mxu0
    %v427 = vadd.f32 %v363, %v426
    %v428 = vpop.f32.mrf.mxu0
    %v429 = vadd.f32 %v363, %v428
    %430 = vmatmul.bf16.gmra.mxu0 %v341
    %v431 = vpop.f32.mrf.mxu0
    %v432 = vadd.f32 %v363, %v431
    %v433 = vpop.f32.mrf.mxu0
    %v434 = vadd.f32 %v363, %v433
    %435 = vmatmul.bf16.gmra.mxu0 %v342
    %v436 = vpop.f32.mrf.mxu0
    %v437 = vadd.f32 %v363, %v436
    %v438 = vpop.f32.mrf.mxu0
    %v439 = vadd.f32 %v363, %v438
    %440 = vmatmul.bf16.gmra.mxu0 %v343
    %v441 = vpop.f32.mrf.mxu0
    %v442 = vadd.f32 %v363, %v441
    %v443 = vpop.f32.mrf.mxu0
    %v444 = vadd.f32 %v363, %v443
    %445 = vmatmul.bf16.gmra.mxu0 %v344
    %v446 = vpop.f32.mrf.mxu0
    %v447 = vadd.f32 %v363, %v446
    %v448 = vpop.f32.mrf.mxu0
    %v449 = vadd.f32 %v363, %v448
    %450 = vmatmul.bf16.gmra.mxu0 %v345
    %v451 = vpop.f32.mrf.mxu0
    %v452 = vadd.f32 %v363, %v451
    %v453 = vpop.f32.mrf.mxu0
    %v454 = vadd.f32 %v363, %v453
    %455 = vmatmul.bf16.gmra.mxu0 %v346
    %v456 = vpop.f32.mrf.mxu0
    %v457 = vadd.f32 %v363, %v456
    %v458 = vpop.f32.mrf.mxu0
    %v459 = vadd.f32 %v363, %v458
    %460 = vdwg.mxu0
    %v461 = vperm.slane %v322, 1
    %v462 = vmul.f32 %v422, %v461
    %v463 = vmul.f32 %v424, %v461
    %v464 = vmul.f32 %v427, %v461
    %v465 = vmul.f32 %v429, %v461
    %v466 = vmul.f32 %v432, %v461
    %v467 = vmul.f32 %v434, %v461
    %v468 = vmul.f32 %v437, %v461
    %v469 = vmul.f32 %v439, %v461
    %v470 = vmul.f32 %v442, %v461
    %v471 = vmul.f32 %v444, %v461
    %v472 = vmul.f32 %v447, %v461
    %v473 = vmul.f32 %v449, %v461
    %v474 = vmul.f32 %v452, %v461
    %v475 = vmul.f32 %v454, %v461
    %v476 = vmul.f32 %v457, %v461
    %v477 = vmul.f32 %v459, %v461
    %v478 = vperm.slane %v322, 2
    %v479 = vadd.f32 %v462, %v478
    %v480 = vadd.f32 %v463, %v478
    %v481 = vadd.f32 %v464, %v478
    %v482 = vadd.f32 %v465, %v478
    %v483 = vadd.f32 %v466, %v478
    %v484 = vadd.f32 %v467, %v478
    %v485 = vadd.f32 %v468, %v478
    %v486 = vadd.f32 %v469, %v478
    %v487 = vadd.f32 %v470, %v478
    %v488 = vadd.f32 %v471, %v478
    %v489 = vadd.f32 %v472, %v478
    %v490 = vadd.f32 %v473, %v478
    %v491 = vadd.f32 %v474, %v478
    %v492 = vadd.f32 %v475, %v478
    %v493 = vadd.f32 %v476, %v478
    %v494 = vadd.f32 %v477, %v478
    %v495 = vmul.f32 %v479, 0.2
    %v496 = vmul.f32 %v480, 0.2
    %v497 = vmul.f32 %v481, 0.2
    %v498 = vmul.f32 %v482, 0.2
    %v499 = vmul.f32 %v483, 0.2
    %v500 = vmul.f32 %v484, 0.2
    %v501 = vmul.f32 %v485, 0.2
    %v502 = vmul.f32 %v486, 0.2
    %v503 = vmul.f32 %v487, 0.2
    %v504 = vmul.f32 %v488, 0.2
    %v505 = vmul.f32 %v489, 0.2
    %v506 = vmul.f32 %v490, 0.2
    %v507 = vmul.f32 %v491, 0.2
    %v508 = vmul.f32 %v492, 0.2
    %v509 = vmul.f32 %v493, 0.2
    %v510 = vmul.f32 %v494, 0.2
    %v511 = vmax.f32 %v479, %v495
    %v512 = vmax.f32 %v480, %v496
    %v513 = vmax.f32 %v481, %v497
    %v514 = vmax.f32 %v482, %v498
    %v515 = vmax.f32 %v483, %v499
    %v516 = vmax.f32 %v484, %v500
    %v517 = vmax.f32 %v485, %v501
    %v518 = vmax.f32 %v486, %v502
    %v519 = vmax.f32 %v487, %v503
    %v520 = vmax.f32 %v488, %v504
    %v521 = vmax.f32 %v489, %v505
    %v522 = vmax.f32 %v490, %v506
    %v523 = vmax.f32 %v491, %v507
    %v524 = vmax.f32 %v492, %v508
    %v525 = vmax.f32 %v493, %v509
    %v526 = vmax.f32 %v494, %v510
    %v527 = vpack.c.bf16 %v511, %v511
    %v528 = vpack.c.bf16 %v512, %v512
    %v529 = vpack.c.bf16 %v513, %v513
    %v530 = vpack.c.bf16 %v514, %v514
    %v531 = vpack.c.bf16 %v515, %v515
    %v532 = vpack.c.bf16 %v516, %v516
    %v533 = vpack.c.bf16 %v517, %v517
    %v534 = vpack.c.bf16 %v518, %v518
    %v535 = vpack.c.bf16 %v519, %v519
    %v536 = vpack.c.bf16 %v520, %v520
    %v537 = vpack.c.bf16 %v521, %v521
    %v538 = vpack.c.bf16 %v522, %v522
    %v539 = vpack.c.bf16 %v523, %v523
    %v540 = vpack.c.bf16 %v524, %v524
    %v541 = vpack.c.bf16 %v525, %v525
    %v542 = vpack.c.bf16 %v526, %v526
    %543 = vst [vmem:[%s6] sm:$0xf] %v527
    %544 = vst [vmem:[%s6 + $0x4] sm:$0xf] %v528
    %545 = vst [vmem:[%s6 + $0x8] sm:$0xf] %v529
    %546 = vst [vmem:[%s6 + $0xc] sm:$0xf] %v530
    %547 = vst [vmem:[%s6 + $0x10] sm:$0xf] %v531
    %548 = vst [vmem:[%s6 + $0x14] sm:$0xf] %v532
    %549 = vst [vmem:[%s6 + $0x18] sm:$0xf] %v533
    %550 = vst [vmem:[%s6 + $0x1c] sm:$0xf] %v534
    %551 = vst [vmem:[%s6 + $0x20] sm:$0xf] %v535
    %552 = vst [vmem:[%s6 + $0x24] sm:$0xf] %v536
    %553 = vst [vmem:[%s6 + $0x28] sm:$0xf] %v537
    %554 = vst [vmem:[%s6 + $0x2c] sm:$0xf] %v538
    %555 = vst [vmem:[%s6 + $0x30] sm:$0xf] %v539
    %556 = vst [vmem:[%s6 + $0x34] sm:$0xf] %v540
    %557 = vst [vmem:[%s6 + $0x38] sm:$0xf] %v541
    %558 = vst [vmem:[%s6 + $0x3c] sm:$0xf] %v542
  $region33: #{gin_forward.3} parent=0 // pred_fallthru
    _
  // Predicated region
  $region34: #{gin_forward.3} parent=0 // pred_check
    _
  $region35: #{gin_forward.3} parent=0 // pred_check_branch
    %560 = sbr.rel (0) target = $region37
  $region36: #{gin_forward.3} parent=0 // pred_region
    _
  $region37: #{gin_forward.3} parent=0 // pred_fallthru
    _
  // Predicated region
  $region38: #{gin_forward.3} parent=0 // pred_check
    _
  $region39: #{gin_forward.3} parent=0 // pred_check_branch
    %562 = sbr.rel (0) target = $region41
  $region40: #{gin_forward.3} parent=0 // pred_region
    _
  $region41: #{gin_forward.3} parent=0 // pred_fallthru
    _

</llo_original>
